<compile_context>
chip_gen: v7x
topology: tpu7x:2x2x1
jax: 0.10.0
libtpu: 0.0.40
codegen_flags: <defaults>
</compile_context>

<pallas_src>
import functools

import jax
import jax.numpy as jnp
from jax import lax
from jax.experimental import pallas as pl
from jax.experimental.pallas import tpu as pltpu

MASK_TOKEN_INDEX = 0


def _round_up(x, m):
    return ((x + m - 1) // m) * m


def _gates_to_hc(gates, c, H):
    """PyTorch LSTM gate order (i, f, g, o); all math in f32."""
    i = jax.nn.sigmoid(gates[:, 0 * H:1 * H])
    f = jax.nn.sigmoid(gates[:, 1 * H:2 * H])
    g = jnp.tanh(gates[:, 2 * H:3 * H])
    o = jax.nn.sigmoid(gates[:, 3 * H:4 * H])
    c_new = f * c + i * g
    h_new = o * jnp.tanh(c_new)
    return h_new, c_new


# --------------------------------------------------------------------------
# Encoder kernel: LSTM over the sequence, emits final (h, c) per batch block.
# Grid = (batch blocks [parallel], time blocks [arbitrary]).
# --------------------------------------------------------------------------
def _encoder_kernel(valid_ref,            # SMEM (T_pad,) int32  (scalar prefetch)
                    x_ref,                # VMEM (tT, tB, H) bf16 embedded tokens
                    w_ih_ref, w_hh_ref,   # VMEM (H, 4H) bf16
                    b_ref,                # VMEM (1, 4H) f32
                    h_ref, c_ref,         # outputs (tB, H) f32 -- recurrent carry
                    pre_ref,              # VMEM scratch (tT, tB, 4H) f32
                    *, tT, H):
    t_idx = pl.program_id(1)

    @pl.when(t_idx == 0)
    def _():
        # encoder.initHidden(): zeros repeated across the batch
        h_ref[...] = jnp.zeros_like(h_ref)
        c_ref[...] = jnp.zeros_like(c_ref)

    tB = x_ref.shape[1]

    # Hoisted input-side matmul: one big MXU pass for the whole time block.
    x2d = x_ref[...].reshape(tT * tB, H)
    pre = jnp.dot(x2d, w_ih_ref[...], preferred_element_type=jnp.float32) + b_ref[...]
    pre_ref[...] = pre.reshape(tT, tB, 4 * H)

    w_hh = w_hh_ref[...]
    t0 = t_idx * tT

    def step(i, carry):
        @pl.when(valid_ref[t0 + i] != 0)
        def _():
            h = h_ref[...]
            c = c_ref[...]
            gates = pre_ref[i] + jnp.dot(h.astype(w_hh.dtype), w_hh,
                                         preferred_element_type=jnp.float32)
            h_new, c_new = _gates_to_hc(gates, c, H)
            h_ref[...] = h_new
            c_ref[...] = c_new
        return carry

    lax.fori_loop(0, tT, step, 0, unroll=True)


# --------------------------------------------------------------------------
# Decoder kernel: masked LSTM + linear head, seeded by the encoder state.
# --------------------------------------------------------------------------
def _decoder_kernel(any_ref,              # SMEM (T_pad,) int32  (scalar prefetch)
                    x_ref,                # VMEM (tT, tB, H) bf16 embedded masked tokens
                    w_ih_ref, w_hh_ref,   # VMEM (H, 4H) bf16
                    b_ref,                # VMEM (1, 4H) f32
                    w_out_ref,            # VMEM (H, O_pad) bf16
                    b_out_ref,            # VMEM (1, O_pad) f32
                    h0_ref, c0_ref,       # VMEM (tB, H) f32 encoder final state
                    out_ref,              # VMEM (tT, tB, O_pad) f32
                    h_sc, c_sc,           # VMEM scratch (tB, H) f32
                    pre_ref,              # VMEM scratch (tT, tB, 4H) f32
                    *, tT, H):
    t_idx = pl.program_id(1)

    @pl.when(t_idx == 0)
    def _():
        h_sc[...] = h0_ref[...]
        c_sc[...] = c0_ref[...]

    tB = x_ref.shape[1]
    O_pad = out_ref.shape[2]

    # Hoisted input-side matmul for the whole time block.
    x2d = x_ref[...].reshape(tT * tB, H)
    pre = jnp.dot(x2d, w_ih_ref[...], preferred_element_type=jnp.float32) + b_ref[...]
    pre_ref[...] = pre.reshape(tT, tB, 4 * H)

    w_hh = w_hh_ref[...]
    w_out = w_out_ref[...]
    b_out = jnp.broadcast_to(b_out_ref[...], (tB, O_pad))   # hoisted out of the loop
    zeros_row = jnp.zeros((tB, O_pad), out_ref.dtype)
    t0 = t_idx * tT

    def step(i, carry):
        any_t = any_ref[t0 + i]

        @pl.when(any_t != 0)
        def _():
            h = h_sc[...]
            c = c_sc[...]
            gates = pre_ref[i] + jnp.dot(h.astype(w_hh.dtype), w_hh,
                                         preferred_element_type=jnp.float32)
            h_new, c_new = _gates_to_hc(gates, c, H)
            h_sc[...] = h_new
            c_sc[...] = c_new
            logits = jnp.dot(h_new.astype(w_out.dtype), w_out,
                             preferred_element_type=jnp.float32) + b_out
            out_ref[i] = logits

        @pl.when(any_t == 0)
        def _():
            # decoder skipped: hidden state unchanged, outputs stay zero
            out_ref[i] = zeros_row

        return carry

    lax.fori_loop(0, tT, step, 0, unroll=True)


# --------------------------------------------------------------------------
# Parameters & wrapper
# --------------------------------------------------------------------------
def init_params(key, vocab, hidden, output_size):
    ks = jax.random.split(key, 10)
    s = 0.1
    return {
        "emb_enc": s * jax.random.normal(ks[0], (vocab, hidden), jnp.float32),
        "emb_dec": s * jax.random.normal(ks[1], (vocab, hidden), jnp.float32),
        # LSTM weights stored transposed: (in, 4H)
        "w_ih_e": s * jax.random.normal(ks[2], (hidden, 4 * hidden), jnp.float32),
        "w_hh_e": s * jax.random.normal(ks[3], (hidden, 4 * hidden), jnp.float32),
        "b_e":    s * jax.random.normal(ks[4], (1, 4 * hidden), jnp.float32),
        "w_ih_d": s * jax.random.normal(ks[5], (hidden, 4 * hidden), jnp.float32),
        "w_hh_d": s * jax.random.normal(ks[6], (hidden, 4 * hidden), jnp.float32),
        "b_d":    s * jax.random.normal(ks[7], (1, 4 * hidden), jnp.float32),
        "w_out":  s * jax.random.normal(ks[8], (hidden, output_size), jnp.float32),
        "b_out":  s * jax.random.normal(ks[9], (1, output_size), jnp.float32),
    }


def generator_forward(params, input_seq, mask_indices, output_size, *, tT=None, tB=None):
    """input_seq: (B, T) int32 tokens; mask_indices: (B, T) bool. Returns (B, T, O)."""
    B, T = input_seq.shape
    H = params["emb_enc"].shape[1]
    O = output_size

    # ---------- layout plumbing (padding / tiling decisions) ----------
    B_pad = _round_up(B, 8)                 # f32 sublane
    O_pad = _round_up(O, 128)               # lane-dense output stores
    if tB is None:
        tB = min(B_pad, 256)
    B_pad = _round_up(B_pad, tB)
    if tT is None:
        tT = min(128, _round_up(T, 8))
    T_pad = _round_up(T, tT)
    nB = B_pad // tB
    nT = T_pad // tT

    # ---------- glue in plain JAX: embeddings, masking, layout ----------
    enc_emb = jnp.take(params["emb_enc"], input_seq, axis=0)              # (B, T, H)
    decoder_input = jnp.where(mask_indices, MASK_TOKEN_INDEX, input_seq)
    dec_emb = jnp.take(params["emb_dec"], decoder_input, axis=0)          # (B, T, H)

    def to_time_major(x):
        x = jnp.transpose(x, (1, 0, 2)).astype(jnp.bfloat16)              # (T, B, H)
        return jnp.pad(x, ((0, T_pad - T), (0, B_pad - B), (0, 0)))
    enc_emb_t = to_time_major(enc_emb)
    dec_emb_t = to_time_major(dec_emb)

    # per-timestep scalar flags -> SMEM via scalar prefetch
    enc_valid = jnp.pad(jnp.ones((T,), jnp.int32), (0, T_pad - T))
    dec_any = jnp.pad(jnp.any(mask_indices, axis=0).astype(jnp.int32), (0, T_pad - T))

    # bf16 weights (f32 biases / accumulation); pad the output head to O_pad lanes
    w_ih_e = params["w_ih_e"].astype(jnp.bfloat16)
    w_hh_e = params["w_hh_e"].astype(jnp.bfloat16)
    b_e = params["b_e"].astype(jnp.float32)
    w_ih_d = params["w_ih_d"].astype(jnp.bfloat16)
    w_hh_d = params["w_hh_d"].astype(jnp.bfloat16)
    b_d = params["b_d"].astype(jnp.float32)
    w_out = jnp.pad(params["w_out"], ((0, 0), (0, O_pad - O))).astype(jnp.bfloat16)
    b_out = jnp.pad(params["b_out"], ((0, 0), (0, O_pad - O))).astype(jnp.float32)

    vmem_full = pl.BlockSpec(memory_space=pltpu.MemorySpace.VMEM)
    # batch blocks are independent through the recurrence -> megacore on v7x;
    # time axis carries the recurrence -> "arbitrary".
    cparams = pltpu.CompilerParams(
        dimension_semantics=("parallel", "arbitrary"))

    # ---------------- encoder pass ----------------
    h_enc, c_enc = pl.pallas_call(
        functools.partial(_encoder_kernel, tT=tT, H=H),
        out_shape=(jax.ShapeDtypeStruct((B_pad, H), jnp.float32),
                   jax.ShapeDtypeStruct((B_pad, H), jnp.float32)),
        grid_spec=pltpu.PrefetchScalarGridSpec(
            num_scalar_prefetch=1,
            grid=(nB, nT),
            in_specs=[
                pl.BlockSpec((tT, tB, H), lambda b, t, flags: (t, b, 0)),
                vmem_full, vmem_full, vmem_full,
            ],
            out_specs=(pl.BlockSpec((tB, H), lambda b, t, flags: (b, 0)),
                       pl.BlockSpec((tB, H), lambda b, t, flags: (b, 0))),
            scratch_shapes=[pltpu.VMEM((tT, tB, 4 * H), jnp.float32)],
        ),
        compiler_params=cparams,
    )(enc_valid, enc_emb_t, w_ih_e, w_hh_e, b_e)

    # ---------------- decoder pass ----------------
    out_pad = pl.pallas_call(
        functools.partial(_decoder_kernel, tT=tT, H=H),
        out_shape=jax.ShapeDtypeStruct((T_pad, B_pad, O_pad), jnp.float32),
        grid_spec=pltpu.PrefetchScalarGridSpec(
            num_scalar_prefetch=1,
            grid=(nB, nT),
            in_specs=[
                pl.BlockSpec((tT, tB, H), lambda b, t, flags: (t, b, 0)),
                vmem_full, vmem_full, vmem_full, vmem_full, vmem_full,
                pl.BlockSpec((tB, H), lambda b, t, flags: (b, 0)),
                pl.BlockSpec((tB, H), lambda b, t, flags: (b, 0)),
            ],
            out_specs=pl.BlockSpec((tT, tB, O_pad), lambda b, t, flags: (t, b, 0)),
            scratch_shapes=[pltpu.VMEM((tB, H), jnp.float32),
                            pltpu.VMEM((tB, H), jnp.float32),
                            pltpu.VMEM((tT, tB, 4 * H), jnp.float32)],
        ),
        compiler_params=cparams,
    )(dec_any, dec_emb_t, w_ih_d, w_hh_d, b_d, w_out, b_out, h_enc, c_enc)

    out = jnp.transpose(out_pad[:T, :B, :O], (1, 0, 2))          # (B, T, O)
    # outputs[is_masked, t, :] = logits, everything else 0 (applied lane-dense
    # in the wrapper instead of carrying a (T, B, 1) mask into the kernel)
    return jnp.where(mask_indices[..., None], out, 0.0)


# --------------------------------------------------------------------------
# Pure-JAX f32 reference (mirrors the PyTorch forward) for a sanity check.
# --------------------------------------------------------------------------
def _reference_forward(params, input_seq, mask_indices, output_size):
    B, T = input_seq.shape
    H = params["emb_enc"].shape[1]
    enc_emb = jnp.take(params["emb_enc"], input_seq, axis=0)
    dec_in = jnp.where(mask_indices, MASK_TOKEN_INDEX, input_seq)
    dec_emb = jnp.take(params["emb_dec"], dec_in, axis=0)

    def cell(x, h, c, w_ih, w_hh, b):
        gates = x @ w_ih + h @ w_hh + b
        i = jax.nn.sigmoid(gates[:, :H]); f = jax.nn.sigmoid(gates[:, H:2 * H])
        g = jnp.tanh(gates[:, 2 * H:3 * H]); o = jax.nn.sigmoid(gates[:, 3 * H:])
        c = f * c + i * g
        return o * jnp.tanh(c), c

    h = jnp.zeros((B, H), jnp.float32)
    c = jnp.zeros((B, H), jnp.float32)
    for t in range(T):
        h, c = cell(enc_emb[:, t], h, c, params["w_ih_e"], params["w_hh_e"], params["b_e"])
    outs = jnp.zeros((B, T, output_size), jnp.float32)
    for t in range(T):
        if bool(jnp.any(mask_indices[:, t])):
            h, c = cell(dec_emb[:, t], h, c, params["w_ih_d"], params["w_hh_d"], params["b_d"])
            logits = h @ params["w_out"] + params["b_out"]
            outs = outs.at[:, t, :].set(
                jnp.where(mask_indices[:, t][:, None], logits, 0.0))
    return outs


if __name__ == "__main__":
    B, T, H, V, O = 2, 8, 32, 16, 16

    key = jax.random.PRNGKey(0)
    k_param, k_seq, k_mask = jax.random.split(key, 3)

    params = init_params(k_param, V, H, O)
    input_seq = jax.random.randint(k_seq, (B, T), 0, V, dtype=jnp.int32)
    mask_indices = jax.random.bernoulli(k_mask, 0.5, (B, T))

    out = generator_forward(params, input_seq, mask_indices, O)
    out = jax.block_until_ready(out)
    assert out.shape == (B, T, O)
    assert bool(jnp.all(jnp.isfinite(out)))

    ref = _reference_forward(params, input_seq, mask_indices, O)
    max_err = float(jnp.max(jnp.abs(out - ref)))
    assert max_err < 0.25, f"numeric mismatch vs f32 reference: {max_err}"

    print("KERNEL_OK")
</pallas_src>

<mosaic_0001>
module attributes {stable_mosaic.version = 11 : i64} {
  func.func @_encoder_kernel(%arg0: i32, %arg1: i32, %arg2: memref<8xi32, #tpu.memory_space<smem>>, %arg3: memref<8x8x32xbf16, #tpu.memory_space<vmem>>, %arg4: memref<32x128xbf16, #tpu.memory_space<vmem>>, %arg5: memref<32x128xbf16, #tpu.memory_space<vmem>>, %arg6: memref<1x128xf32, #tpu.memory_space<vmem>>, %arg7: memref<8x32xf32, #tpu.memory_space<vmem>>, %arg8: memref<8x32xf32, #tpu.memory_space<vmem>>, %arg9: memref<8x8x128xf32, #tpu.memory_space<vmem>>) attributes {dimension_semantics = [#tpu.dimension_semantics<parallel>, #tpu.dimension_semantics<arbitrary>], iteration_bounds = array<i64: 1, 1>, scalar_prefetch = 1 : i64, scratch_operands = 1 : i64, tpu.core_type = #tpu.core_type<tc>, window_params = [{transform_indices = @transform_0, window_bounds = array<i64: 8, 8, 32>}, {pipeline_mode = #tpu.pipeline_mode<synchronous>, transform_indices = @transform_1, window_bounds = array<i64: 32, 128>}, {pipeline_mode = #tpu.pipeline_mode<synchronous>, transform_indices = @transform_2, window_bounds = array<i64: 32, 128>}, {pipeline_mode = #tpu.pipeline_mode<synchronous>, transform_indices = @transform_3, window_bounds = array<i64: 1, 128>}, {transform_indices = @transform_4, window_bounds = array<i64: 8, 32>}, {transform_indices = @transform_5, window_bounds = array<i64: 8, 32>}]} {
    %c0_i32 = arith.constant 0 : i32
    %0 = arith.cmpi eq, %arg1, %c0_i32 : i32
    %1 = arith.extui %0 : i1 to i32
    %c0_i32_0 = arith.constant 0 : i32
    %2 = arith.cmpi ne, %1, %c0_i32_0 : i32
    scf.if %2 {
      %cst_30 = arith.constant 0.000000e+00 : f32
      %62 = vector.broadcast %cst_30 : f32 to vector<8x32xf32>
      %c0_31 = arith.constant 0 : index
      %c0_32 = arith.constant 0 : index
      %63 = vector.load %arg7[%c0_31, %c0_32] : memref<8x32xf32, #tpu.memory_space<vmem>>, vector<8x32xf32>
      tpu.vector_store %arg7[%c0_31, %c0_32], %62 {strides = array<i32>} : memref<8x32xf32, #tpu.memory_space<vmem>>, vector<8x32xf32>,
      %cst_33 = arith.constant 0.000000e+00 : f32
      %64 = vector.broadcast %cst_33 : f32 to vector<8x32xf32>
      %c0_34 = arith.constant 0 : index
      %c0_35 = arith.constant 0 : index
      %65 = vector.load %arg8[%c0_34, %c0_35] : memref<8x32xf32, #tpu.memory_space<vmem>>, vector<8x32xf32>
      tpu.vector_store %arg8[%c0_34, %c0_35], %64 {strides = array<i32>} : memref<8x32xf32, #tpu.memory_space<vmem>>, vector<8x32xf32>,
    } else {
    }
    %c0 = arith.constant 0 : index
    %c0_1 = arith.constant 0 : index
    %c0_2 = arith.constant 0 : index
    %3 = vector.load %arg3[%c0, %c0_1, %c0_2] : memref<8x8x32xbf16, #tpu.memory_space<vmem>>, vector<8x8x32xbf16>
    %4 = vector.shape_cast %3 : vector<8x8x32xbf16> to vector<64x32xbf16>
    %c0_3 = arith.constant 0 : index
    %c0_4 = arith.constant 0 : index
    %5 = vector.load %arg4[%c0_3, %c0_4] : memref<32x128xbf16, #tpu.memory_space<vmem>>, vector<32x128xbf16>
    %cst = arith.constant dense<0.000000e+00> : vector<64x128xf32>
    %6 = tpu.matmul %4, %5, %cst {dimension_numbers = #tpu.dot_dimension_numbers<[1], [0], [0], [1], [0, 0, 1, 1], [], []>} : vector<64x32xbf16>, vector<32x128xbf16>, vector<64x128xf32> -> vector<64x128xf32>
    %c0_5 = arith.constant 0 : index
    %c0_6 = arith.constant 0 : index
    %7 = vector.load %arg6[%c0_5, %c0_6] : memref<1x128xf32, #tpu.memory_space<vmem>>, vector<1x128xf32>
    %8 = vector.broadcast %7 : vector<1x128xf32> to vector<64x128xf32>
    %9 = arith.addf %6, %8 : vector<64x128xf32>
    %10 = vector.shape_cast %9 : vector<64x128xf32> to vector<8x8x128xf32>
    %c0_7 = arith.constant 0 : index
    %c0_8 = arith.constant 0 : index
    %c0_9 = arith.constant 0 : index
    %11 = vector.load %arg9[%c0_7, %c0_8, %c0_9] : memref<8x8x128xf32, #tpu.memory_space<vmem>>, vector<8x8x128xf32>
    tpu.vector_store %arg9[%c0_7, %c0_8, %c0_9], %10 {strides = array<i32>} : memref<8x8x128xf32, #tpu.memory_space<vmem>>, vector<8x8x128xf32>,
    %c0_10 = arith.constant 0 : index
    %c0_11 = arith.constant 0 : index
    %12 = vector.load %arg5[%c0_10, %c0_11] : memref<32x128xbf16, #tpu.memory_space<vmem>>, vector<32x128xbf16>
    %c8_i32 = arith.constant 8 : i32
    %13 = arith.muli %arg1, %c8_i32 : i32
    %c0_i32_12 = arith.constant 0 : i32
    %14 = arith.addi %13, %c0_i32_12 : i32
    %15 = arith.index_cast %14 : i32 to index
    %16 = memref.load %arg2[%15] : memref<8xi32, #tpu.memory_space<smem>>
    %c0_i32_13 = arith.constant 0 : i32
    %17 = arith.cmpi ne, %16, %c0_i32_13 : i32
    %18 = arith.extui %17 : i1 to i32
    %c0_i32_14 = arith.constant 0 : i32
    %19 = arith.cmpi ne, %18, %c0_i32_14 : i32
    scf.if %19 {
      %c0_30 = arith.constant 0 : index
      %c0_31 = arith.constant 0 : index
      %62 = vector.load %arg7[%c0_30, %c0_31] : memref<8x32xf32, #tpu.memory_space<vmem>>, vector<8x32xf32>
      %c0_32 = arith.constant 0 : index
      %c0_33 = arith.constant 0 : index
      %63 = vector.load %arg8[%c0_32, %c0_33] : memref<8x32xf32, #tpu.memory_space<vmem>>, vector<8x32xf32>
      %64 = arith.index_cast %c0_i32_12 : i32 to index
      %c0_34 = arith.constant 0 : index
      %c0_35 = arith.constant 0 : index
      %65 = vector.load %arg9[%64, %c0_34, %c0_35] : memref<8x8x128xf32, #tpu.memory_space<vmem>>, vector<1x8x128xf32>
      %66 = vector.shape_cast %65 : vector<1x8x128xf32> to vector<8x128xf32>
      %67 = arith.truncf %62 : vector<8x32xf32> to vector<8x32xbf16>
      %cst_36 = arith.constant dense<0.000000e+00> : vector<8x128xf32>
      %68 = tpu.matmul %67, %12, %cst_36 {dimension_numbers = #tpu.dot_dimension_numbers<[1], [0], [0], [1], [0, 0, 1, 1], [], []>} : vector<8x32xbf16>, vector<32x128xbf16>, vector<8x128xf32> -> vector<8x128xf32>
      %69 = arith.addf %66, %68 : vector<8x128xf32>
      %70 = vector.extract_strided_slice %69 {offsets = [0, 0], sizes = [8, 32], strides = [1, 1]} : vector<8x128xf32> to vector<8x32xf32>
      %71 = arith.negf %70 : vector<8x32xf32>
      %72 = math.exp %71 : vector<8x32xf32>
      %cst_37 = arith.constant 1.000000e+00 : f32
      %73 = vector.broadcast %cst_37 : f32 to vector<8x32xf32>
      %74 = arith.addf %73, %72 : vector<8x32xf32>
      %75 = arith.divf %73, %74 : vector<8x32xf32>
      %76 = vector.extract_strided_slice %69 {offsets = [0, 32], sizes = [8, 32], strides = [1, 1]} : vector<8x128xf32> to vector<8x32xf32>
      %77 = arith.negf %76 : vector<8x32xf32>
      %78 = math.exp %77 : vector<8x32xf32>
      %cst_38 = arith.constant 1.000000e+00 : f32
      %79 = vector.broadcast %cst_38 : f32 to vector<8x32xf32>
      %80 = arith.addf %79, %78 : vector<8x32xf32>
      %81 = arith.divf %79, %80 : vector<8x32xf32>
      %82 = vector.extract_strided_slice %69 {offsets = [0, 64], sizes = [8, 32], strides = [1, 1]} : vector<8x128xf32> to vector<8x32xf32>
      %83 = math.tanh %82 : vector<8x32xf32>
      %84 = vector.extract_strided_slice %69 {offsets = [0, 96], sizes = [8, 32], strides = [1, 1]} : vector<8x128xf32> to vector<8x32xf32>
      %85 = arith.negf %84 : vector<8x32xf32>
      %86 = math.exp %85 : vector<8x32xf32>
      %cst_39 = arith.constant 1.000000e+00 : f32
      %87 = vector.broadcast %cst_39 : f32 to vector<8x32xf32>
      %88 = arith.addf %87, %86 : vector<8x32xf32>
      %89 = arith.divf %87, %88 : vector<8x32xf32>
      %90 = arith.mulf %81, %63 : vector<8x32xf32>
      %91 = arith.mulf %75, %83 : vector<8x32xf32>
      %92 = arith.addf %90, %91 : vector<8x32xf32>
      %93 = math.tanh %92 : vector<8x32xf32>
      %94 = arith.mulf %89, %93 : vector<8x32xf32>
      %c0_40 = arith.constant 0 : index
      %c0_41 = arith.constant 0 : index
      %95 = vector.load %arg7[%c0_40, %c0_41] : memref<8x32xf32, #tpu.memory_space<vmem>>, vector<8x32xf32>
      tpu.vector_store %arg7[%c0_40, %c0_41], %94 {strides = array<i32>} : memref<8x32xf32, #tpu.memory_space<vmem>>, vector<8x32xf32>,
      %c0_42 = arith.constant 0 : index
      %c0_43 = arith.constant 0 : index
      %96 = vector.load %arg8[%c0_42, %c0_43] : memref<8x32xf32, #tpu.memory_space<vmem>>, vector<8x32xf32>
      tpu.vector_store %arg8[%c0_42, %c0_43], %92 {strides = array<i32>} : memref<8x32xf32, #tpu.memory_space<vmem>>, vector<8x32xf32>,
    } else {
    }
    %c1_i32 = arith.constant 1 : i32
    %20 = arith.addi %13, %c1_i32 : i32
    %21 = arith.index_cast %20 : i32 to index
    %22 = memref.load %arg2[%21] : memref<8xi32, #tpu.memory_space<smem>>
    %c0_i32_15 = arith.constant 0 : i32
    %23 = arith.cmpi ne, %22, %c0_i32_15 : i32
    %24 = arith.extui %23 : i1 to i32
    %c0_i32_16 = arith.constant 0 : i32
    %25 = arith.cmpi ne, %24, %c0_i32_16 : i32
    scf.if %25 {
      %c0_30 = arith.constant 0 : index
      %c0_31 = arith.constant 0 : index
      %62 = vector.load %arg7[%c0_30, %c0_31] : memref<8x32xf32, #tpu.memory_space<vmem>>, vector<8x32xf32>
      %c0_32 = arith.constant 0 : index
      %c0_33 = arith.constant 0 : index
      %63 = vector.load %arg8[%c0_32, %c0_33] : memref<8x32xf32, #tpu.memory_space<vmem>>, vector<8x32xf32>
      %64 = arith.index_cast %c1_i32 : i32 to index
      %c0_34 = arith.constant 0 : index
      %c0_35 = arith.constant 0 : index
      %65 = vector.load %arg9[%64, %c0_34, %c0_35] : memref<8x8x128xf32, #tpu.memory_space<vmem>>, vector<1x8x128xf32>
      %66 = vector.shape_cast %65 : vector<1x8x128xf32> to vector<8x128xf32>
      %67 = arith.truncf %62 : vector<8x32xf32> to vector<8x32xbf16>
      %cst_36 = arith.constant dense<0.000000e+00> : vector<8x128xf32>
      %68 = tpu.matmul %67, %12, %cst_36 {dimension_numbers = #tpu.dot_dimension_numbers<[1], [0], [0], [1], [0, 0, 1, 1], [], []>} : vector<8x32xbf16>, vector<32x128xbf16>, vector<8x128xf32> -> vector<8x128xf32>
      %69 = arith.addf %66, %68 : vector<8x128xf32>
      %70 = vector.extract_strided_slice %69 {offsets = [0, 0], sizes = [8, 32], strides = [1, 1]} : vector<8x128xf32> to vector<8x32xf32>
      %71 = arith.negf %70 : vector<8x32xf32>
      %72 = math.exp %71 : vector<8x32xf32>
      %cst_37 = arith.constant 1.000000e+00 : f32
      %73 = vector.broadcast %cst_37 : f32 to vector<8x32xf32>
      %74 = arith.addf %73, %72 : vector<8x32xf32>
      %75 = arith.divf %73, %74 : vector<8x32xf32>
      %76 = vector.extract_strided_slice %69 {offsets = [0, 32], sizes = [8, 32], strides = [1, 1]} : vector<8x128xf32> to vector<8x32xf32>
      %77 = arith.negf %76 : vector<8x32xf32>
      %78 = math.exp %77 : vector<8x32xf32>
      %cst_38 = arith.constant 1.000000e+00 : f32
      %79 = vector.broadcast %cst_38 : f32 to vector<8x32xf32>
      %80 = arith.addf %79, %78 : vector<8x32xf32>
      %81 = arith.divf %79, %80 : vector<8x32xf32>
      %82 = vector.extract_strided_slice %69 {offsets = [0, 64], sizes = [8, 32], strides = [1, 1]} : vector<8x128xf32> to vector<8x32xf32>
      %83 = math.tanh %82 : vector<8x32xf32>
      %84 = vector.extract_strided_slice %69 {offsets = [0, 96], sizes = [8, 32], strides = [1, 1]} : vector<8x128xf32> to vector<8x32xf32>
      %85 = arith.negf %84 : vector<8x32xf32>
      %86 = math.exp %85 : vector<8x32xf32>
      %cst_39 = arith.constant 1.000000e+00 : f32
      %87 = vector.broadcast %cst_39 : f32 to vector<8x32xf32>
      %88 = arith.addf %87, %86 : vector<8x32xf32>
      %89 = arith.divf %87, %88 : vector<8x32xf32>
      %90 = arith.mulf %81, %63 : vector<8x32xf32>
      %91 = arith.mulf %75, %83 : vector<8x32xf32>
      %92 = arith.addf %90, %91 : vector<8x32xf32>
      %93 = math.tanh %92 : vector<8x32xf32>
      %94 = arith.mulf %89, %93 : vector<8x32xf32>
      %c0_40 = arith.constant 0 : index
      %c0_41 = arith.constant 0 : index
      %95 = vector.load %arg7[%c0_40, %c0_41] : memref<8x32xf32, #tpu.memory_space<vmem>>, vector<8x32xf32>
      tpu.vector_store %arg7[%c0_40, %c0_41], %94 {strides = array<i32>} : memref<8x32xf32, #tpu.memory_space<vmem>>, vector<8x32xf32>,
      %c0_42 = arith.constant 0 : index
      %c0_43 = arith.constant 0 : index
      %96 = vector.load %arg8[%c0_42, %c0_43] : memref<8x32xf32, #tpu.memory_space<vmem>>, vector<8x32xf32>
      tpu.vector_store %arg8[%c0_42, %c0_43], %92 {strides = array<i32>} : memref<8x32xf32, #tpu.memory_space<vmem>>, vector<8x32xf32>,
    } else {
    }
    %c2_i32 = arith.constant 2 : i32
    %26 = arith.addi %13, %c2_i32 : i32
    %27 = arith.index_cast %26 : i32 to index
    %28 = memref.load %arg2[%27] : memref<8xi32, #tpu.memory_space<smem>>
    %c0_i32_17 = arith.constant 0 : i32
    %29 = arith.cmpi ne, %28, %c0_i32_17 : i32
    %30 = arith.extui %29 : i1 to i32
    %c0_i32_18 = arith.constant 0 : i32
    %31 = arith.cmpi ne, %30, %c0_i32_18 : i32
    scf.if %31 {
      %c0_30 = arith.constant 0 : index
      %c0_31 = arith.constant 0 : index
      %62 = vector.load %arg7[%c0_30, %c0_31] : memref<8x32xf32, #tpu.memory_space<vmem>>, vector<8x32xf32>
      %c0_32 = arith.constant 0 : index
      %c0_33 = arith.constant 0 : index
      %63 = vector.load %arg8[%c0_32, %c0_33] : memref<8x32xf32, #tpu.memory_space<vmem>>, vector<8x32xf32>
      %64 = arith.index_cast %c2_i32 : i32 to index
      %c0_34 = arith.constant 0 : index
      %c0_35 = arith.constant 0 : index
      %65 = vector.load %arg9[%64, %c0_34, %c0_35] : memref<8x8x128xf32, #tpu.memory_space<vmem>>, vector<1x8x128xf32>
      %66 = vector.shape_cast %65 : vector<1x8x128xf32> to vector<8x128xf32>
      %67 = arith.truncf %62 : vector<8x32xf32> to vector<8x32xbf16>
      %cst_36 = arith.constant dense<0.000000e+00> : vector<8x128xf32>
      %68 = tpu.matmul %67, %12, %cst_36 {dimension_numbers = #tpu.dot_dimension_numbers<[1], [0], [0], [1], [0, 0, 1, 1], [], []>} : vector<8x32xbf16>, vector<32x128xbf16>, vector<8x128xf32> -> vector<8x128xf32>
      %69 = arith.addf %66, %68 : vector<8x128xf32>
      %70 = vector.extract_strided_slice %69 {offsets = [0, 0], sizes = [8, 32], strides = [1, 1]} : vector<8x128xf32> to vector<8x32xf32>
      %71 = arith.negf %70 : vector<8x32xf32>
      %72 = math.exp %71 : vector<8x32xf32>
      %cst_37 = arith.constant 1.000000e+00 : f32
      %73 = vector.broadcast %cst_37 : f32 to vector<8x32xf32>
      %74 = arith.addf %73, %72 : vector<8x32xf32>
      %75 = arith.divf %73, %74 : vector<8x32xf32>
      %76 = vector.extract_strided_slice %69 {offsets = [0, 32], sizes = [8, 32], strides = [1, 1]} : vector<8x128xf32> to vector<8x32xf32>
      %77 = arith.negf %76 : vector<8x32xf32>
      %78 = math.exp %77 : vector<8x32xf32>
      %cst_38 = arith.constant 1.000000e+00 : f32
      %79 = vector.broadcast %cst_38 : f32 to vector<8x32xf32>
      %80 = arith.addf %79, %78 : vector<8x32xf32>
      %81 = arith.divf %79, %80 : vector<8x32xf32>
      %82 = vector.extract_strided_slice %69 {offsets = [0, 64], sizes = [8, 32], strides = [1, 1]} : vector<8x128xf32> to vector<8x32xf32>
      %83 = math.tanh %82 : vector<8x32xf32>
      %84 = vector.extract_strided_slice %69 {offsets = [0, 96], sizes = [8, 32], strides = [1, 1]} : vector<8x128xf32> to vector<8x32xf32>
      %85 = arith.negf %84 : vector<8x32xf32>
      %86 = math.exp %85 : vector<8x32xf32>
      %cst_39 = arith.constant 1.000000e+00 : f32
      %87 = vector.broadcast %cst_39 : f32 to vector<8x32xf32>
      %88 = arith.addf %87, %86 : vector<8x32xf32>
      %89 = arith.divf %87, %88 : vector<8x32xf32>
      %90 = arith.mulf %81, %63 : vector<8x32xf32>
      %91 = arith.mulf %75, %83 : vector<8x32xf32>
      %92 = arith.addf %90, %91 : vector<8x32xf32>
      %93 = math.tanh %92 : vector<8x32xf32>
      %94 = arith.mulf %89, %93 : vector<8x32xf32>
      %c0_40 = arith.constant 0 : index
      %c0_41 = arith.constant 0 : index
      %95 = vector.load %arg7[%c0_40, %c0_41] : memref<8x32xf32, #tpu.memory_space<vmem>>, vector<8x32xf32>
      tpu.vector_store %arg7[%c0_40, %c0_41], %94 {strides = array<i32>} : memref<8x32xf32, #tpu.memory_space<vmem>>, vector<8x32xf32>,
      %c0_42 = arith.constant 0 : index
      %c0_43 = arith.constant 0 : index
      %96 = vector.load %arg8[%c0_42, %c0_43] : memref<8x32xf32, #tpu.memory_space<vmem>>, vector<8x32xf32>
      tpu.vector_store %arg8[%c0_42, %c0_43], %92 {strides = array<i32>} : memref<8x32xf32, #tpu.memory_space<vmem>>, vector<8x32xf32>,
    } else {
    }
    %c3_i32 = arith.constant 3 : i32
    %32 = arith.addi %13, %c3_i32 : i32
    %33 = arith.index_cast %32 : i32 to index
    %34 = memref.load %arg2[%33] : memref<8xi32, #tpu.memory_space<smem>>
    %c0_i32_19 = arith.constant 0 : i32
    %35 = arith.cmpi ne, %34, %c0_i32_19 : i32
    %36 = arith.extui %35 : i1 to i32
    %c0_i32_20 = arith.constant 0 : i32
    %37 = arith.cmpi ne, %36, %c0_i32_20 : i32
    scf.if %37 {
      %c0_30 = arith.constant 0 : index
      %c0_31 = arith.constant 0 : index
      %62 = vector.load %arg7[%c0_30, %c0_31] : memref<8x32xf32, #tpu.memory_space<vmem>>, vector<8x32xf32>
      %c0_32 = arith.constant 0 : index
      %c0_33 = arith.constant 0 : index
      %63 = vector.load %arg8[%c0_32, %c0_33] : memref<8x32xf32, #tpu.memory_space<vmem>>, vector<8x32xf32>
      %64 = arith.index_cast %c3_i32 : i32 to index
      %c0_34 = arith.constant 0 : index
      %c0_35 = arith.constant 0 : index
      %65 = vector.load %arg9[%64, %c0_34, %c0_35] : memref<8x8x128xf32, #tpu.memory_space<vmem>>, vector<1x8x128xf32>
      %66 = vector.shape_cast %65 : vector<1x8x128xf32> to vector<8x128xf32>
      %67 = arith.truncf %62 : vector<8x32xf32> to vector<8x32xbf16>
      %cst_36 = arith.constant dense<0.000000e+00> : vector<8x128xf32>
      %68 = tpu.matmul %67, %12, %cst_36 {dimension_numbers = #tpu.dot_dimension_numbers<[1], [0], [0], [1], [0, 0, 1, 1], [], []>} : vector<8x32xbf16>, vector<32x128xbf16>, vector<8x128xf32> -> vector<8x128xf32>
      %69 = arith.addf %66, %68 : vector<8x128xf32>
      %70 = vector.extract_strided_slice %69 {offsets = [0, 0], sizes = [8, 32], strides = [1, 1]} : vector<8x128xf32> to vector<8x32xf32>
      %71 = arith.negf %70 : vector<8x32xf32>
      %72 = math.exp %71 : vector<8x32xf32>
      %cst_37 = arith.constant 1.000000e+00 : f32
      %73 = vector.broadcast %cst_37 : f32 to vector<8x32xf32>
      %74 = arith.addf %73, %72 : vector<8x32xf32>
      %75 = arith.divf %73, %74 : vector<8x32xf32>
      %76 = vector.extract_strided_slice %69 {offsets = [0, 32], sizes = [8, 32], strides = [1, 1]} : vector<8x128xf32> to vector<8x32xf32>
      %77 = arith.negf %76 : vector<8x32xf32>
      %78 = math.exp %77 : vector<8x32xf32>
      %cst_38 = arith.constant 1.000000e+00 : f32
      %79 = vector.broadcast %cst_38 : f32 to vector<8x32xf32>
      %80 = arith.addf %79, %78 : vector<8x32xf32>
      %81 = arith.divf %79, %80 : vector<8x32xf32>
      %82 = vector.extract_strided_slice %69 {offsets = [0, 64], sizes = [8, 32], strides = [1, 1]} : vector<8x128xf32> to vector<8x32xf32>
      %83 = math.tanh %82 : vector<8x32xf32>
      %84 = vector.extract_strided_slice %69 {offsets = [0, 96], sizes = [8, 32], strides = [1, 1]} : vector<8x128xf32> to vector<8x32xf32>
      %85 = arith.negf %84 : vector<8x32xf32>
      %86 = math.exp %85 : vector<8x32xf32>
      %cst_39 = arith.constant 1.000000e+00 : f32
      %87 = vector.broadcast %cst_39 : f32 to vector<8x32xf32>
      %88 = arith.addf %87, %86 : vector<8x32xf32>
      %89 = arith.divf %87, %88 : vector<8x32xf32>
      %90 = arith.mulf %81, %63 : vector<8x32xf32>
      %91 = arith.mulf %75, %83 : vector<8x32xf32>
      %92 = arith.addf %90, %91 : vector<8x32xf32>
      %93 = math.tanh %92 : vector<8x32xf32>
      %94 = arith.mulf %89, %93 : vector<8x32xf32>
      %c0_40 = arith.constant 0 : index
      %c0_41 = arith.constant 0 : index
      %95 = vector.load %arg7[%c0_40, %c0_41] : memref<8x32xf32, #tpu.memory_space<vmem>>, vector<8x32xf32>
      tpu.vector_store %arg7[%c0_40, %c0_41], %94 {strides = array<i32>} : memref<8x32xf32, #tpu.memory_space<vmem>>, vector<8x32xf32>,
      %c0_42 = arith.constant 0 : index
      %c0_43 = arith.constant 0 : index
      %96 = vector.load %arg8[%c0_42, %c0_43] : memref<8x32xf32, #tpu.memory_space<vmem>>, vector<8x32xf32>
      tpu.vector_store %arg8[%c0_42, %c0_43], %92 {strides = array<i32>} : memref<8x32xf32, #tpu.memory_space<vmem>>, vector<8x32xf32>,
    } else {
    }
    %c4_i32 = arith.constant 4 : i32
    %38 = arith.addi %13, %c4_i32 : i32
    %39 = arith.index_cast %38 : i32 to index
    %40 = memref.load %arg2[%39] : memref<8xi32, #tpu.memory_space<smem>>
    %c0_i32_21 = arith.constant 0 : i32
    %41 = arith.cmpi ne, %40, %c0_i32_21 : i32
    %42 = arith.extui %41 : i1 to i32
    %c0_i32_22 = arith.constant 0 : i32
    %43 = arith.cmpi ne, %42, %c0_i32_22 : i32
    scf.if %43 {
      %c0_30 = arith.constant 0 : index
      %c0_31 = arith.constant 0 : index
      %62 = vector.load %arg7[%c0_30, %c0_31] : memref<8x32xf32, #tpu.memory_space<vmem>>, vector<8x32xf32>
      %c0_32 = arith.constant 0 : index
      %c0_33 = arith.constant 0 : index
      %63 = vector.load %arg8[%c0_32, %c0_33] : memref<8x32xf32, #tpu.memory_space<vmem>>, vector<8x32xf32>
      %64 = arith.index_cast %c4_i32 : i32 to index
      %c0_34 = arith.constant 0 : index
      %c0_35 = arith.constant 0 : index
      %65 = vector.load %arg9[%64, %c0_34, %c0_35] : memref<8x8x128xf32, #tpu.memory_space<vmem>>, vector<1x8x128xf32>
      %66 = vector.shape_cast %65 : vector<1x8x128xf32> to vector<8x128xf32>
      %67 = arith.truncf %62 : vector<8x32xf32> to vector<8x32xbf16>
      %cst_36 = arith.constant dense<0.000000e+00> : vector<8x128xf32>
      %68 = tpu.matmul %67, %12, %cst_36 {dimension_numbers = #tpu.dot_dimension_numbers<[1], [0], [0], [1], [0, 0, 1, 1], [], []>} : vector<8x32xbf16>, vector<32x128xbf16>, vector<8x128xf32> -> vector<8x128xf32>
      %69 = arith.addf %66, %68 : vector<8x128xf32>
      %70 = vector.extract_strided_slice %69 {offsets = [0, 0], sizes = [8, 32], strides = [1, 1]} : vector<8x128xf32> to vector<8x32xf32>
      %71 = arith.negf %70 : vector<8x32xf32>
      %72 = math.exp %71 : vector<8x32xf32>
      %cst_37 = arith.constant 1.000000e+00 : f32
      %73 = vector.broadcast %cst_37 : f32 to vector<8x32xf32>
      %74 = arith.addf %73, %72 : vector<8x32xf32>
      %75 = arith.divf %73, %74 : vector<8x32xf32>
      %76 = vector.extract_strided_slice %69 {offsets = [0, 32], sizes = [8, 32], strides = [1, 1]} : vector<8x128xf32> to vector<8x32xf32>
      %77 = arith.negf %76 : vector<8x32xf32>
      %78 = math.exp %77 : vector<8x32xf32>
      %cst_38 = arith.constant 1.000000e+00 : f32
      %79 = vector.broadcast %cst_38 : f32 to vector<8x32xf32>
      %80 = arith.addf %79, %78 : vector<8x32xf32>
      %81 = arith.divf %79, %80 : vector<8x32xf32>
      %82 = vector.extract_strided_slice %69 {offsets = [0, 64], sizes = [8, 32], strides = [1, 1]} : vector<8x128xf32> to vector<8x32xf32>
      %83 = math.tanh %82 : vector<8x32xf32>
      %84 = vector.extract_strided_slice %69 {offsets = [0, 96], sizes = [8, 32], strides = [1, 1]} : vector<8x128xf32> to vector<8x32xf32>
      %85 = arith.negf %84 : vector<8x32xf32>
      %86 = math.exp %85 : vector<8x32xf32>
      %cst_39 = arith.constant 1.000000e+00 : f32
      %87 = vector.broadcast %cst_39 : f32 to vector<8x32xf32>
      %88 = arith.addf %87, %86 : vector<8x32xf32>
      %89 = arith.divf %87, %88 : vector<8x32xf32>
      %90 = arith.mulf %81, %63 : vector<8x32xf32>
      %91 = arith.mulf %75, %83 : vector<8x32xf32>
      %92 = arith.addf %90, %91 : vector<8x32xf32>
      %93 = math.tanh %92 : vector<8x32xf32>
      %94 = arith.mulf %89, %93 : vector<8x32xf32>
      %c0_40 = arith.constant 0 : index
      %c0_41 = arith.constant 0 : index
      %95 = vector.load %arg7[%c0_40, %c0_41] : memref<8x32xf32, #tpu.memory_space<vmem>>, vector<8x32xf32>
      tpu.vector_store %arg7[%c0_40, %c0_41], %94 {strides = array<i32>} : memref<8x32xf32, #tpu.memory_space<vmem>>, vector<8x32xf32>,
      %c0_42 = arith.constant 0 : index
      %c0_43 = arith.constant 0 : index
      %96 = vector.load %arg8[%c0_42, %c0_43] : memref<8x32xf32, #tpu.memory_space<vmem>>, vector<8x32xf32>
      tpu.vector_store %arg8[%c0_42, %c0_43], %92 {strides = array<i32>} : memref<8x32xf32, #tpu.memory_space<vmem>>, vector<8x32xf32>,
    } else {
    }
    %c5_i32 = arith.constant 5 : i32
    %44 = arith.addi %13, %c5_i32 : i32
    %45 = arith.index_cast %44 : i32 to index
    %46 = memref.load %arg2[%45] : memref<8xi32, #tpu.memory_space<smem>>
    %c0_i32_23 = arith.constant 0 : i32
    %47 = arith.cmpi ne, %46, %c0_i32_23 : i32
    %48 = arith.extui %47 : i1 to i32
    %c0_i32_24 = arith.constant 0 : i32
    %49 = arith.cmpi ne, %48, %c0_i32_24 : i32
    scf.if %49 {
      %c0_30 = arith.constant 0 : index
      %c0_31 = arith.constant 0 : index
      %62 = vector.load %arg7[%c0_30, %c0_31] : memref<8x32xf32, #tpu.memory_space<vmem>>, vector<8x32xf32>
      %c0_32 = arith.constant 0 : index
      %c0_33 = arith.constant 0 : index
      %63 = vector.load %arg8[%c0_32, %c0_33] : memref<8x32xf32, #tpu.memory_space<vmem>>, vector<8x32xf32>
      %64 = arith.index_cast %c5_i32 : i32 to index
      %c0_34 = arith.constant 0 : index
      %c0_35 = arith.constant 0 : index
      %65 = vector.load %arg9[%64, %c0_34, %c0_35] : memref<8x8x128xf32, #tpu.memory_space<vmem>>, vector<1x8x128xf32>
      %66 = vector.shape_cast %65 : vector<1x8x128xf32> to vector<8x128xf32>
      %67 = arith.truncf %62 : vector<8x32xf32> to vector<8x32xbf16>
      %cst_36 = arith.constant dense<0.000000e+00> : vector<8x128xf32>
      %68 = tpu.matmul %67, %12, %cst_36 {dimension_numbers = #tpu.dot_dimension_numbers<[1], [0], [0], [1], [0, 0, 1, 1], [], []>} : vector<8x32xbf16>, vector<32x128xbf16>, vector<8x128xf32> -> vector<8x128xf32>
      %69 = arith.addf %66, %68 : vector<8x128xf32>
      %70 = vector.extract_strided_slice %69 {offsets = [0, 0], sizes = [8, 32], strides = [1, 1]} : vector<8x128xf32> to vector<8x32xf32>
      %71 = arith.negf %70 : vector<8x32xf32>
      %72 = math.exp %71 : vector<8x32xf32>
      %cst_37 = arith.constant 1.000000e+00 : f32
      %73 = vector.broadcast %cst_37 : f32 to vector<8x32xf32>
      %74 = arith.addf %73, %72 : vector<8x32xf32>
      %75 = arith.divf %73, %74 : vector<8x32xf32>
      %76 = vector.extract_strided_slice %69 {offsets = [0, 32], sizes = [8, 32], strides = [1, 1]} : vector<8x128xf32> to vector<8x32xf32>
      %77 = arith.negf %76 : vector<8x32xf32>
      %78 = math.exp %77 : vector<8x32xf32>
      %cst_38 = arith.constant 1.000000e+00 : f32
      %79 = vector.broadcast %cst_38 : f32 to vector<8x32xf32>
      %80 = arith.addf %79, %78 : vector<8x32xf32>
      %81 = arith.divf %79, %80 : vector<8x32xf32>
      %82 = vector.extract_strided_slice %69 {offsets = [0, 64], sizes = [8, 32], strides = [1, 1]} : vector<8x128xf32> to vector<8x32xf32>
      %83 = math.tanh %82 : vector<8x32xf32>
      %84 = vector.extract_strided_slice %69 {offsets = [0, 96], sizes = [8, 32], strides = [1, 1]} : vector<8x128xf32> to vector<8x32xf32>
      %85 = arith.negf %84 : vector<8x32xf32>
      %86 = math.exp %85 : vector<8x32xf32>
      %cst_39 = arith.constant 1.000000e+00 : f32
      %87 = vector.broadcast %cst_39 : f32 to vector<8x32xf32>
      %88 = arith.addf %87, %86 : vector<8x32xf32>
      %89 = arith.divf %87, %88 : vector<8x32xf32>
      %90 = arith.mulf %81, %63 : vector<8x32xf32>
      %91 = arith.mulf %75, %83 : vector<8x32xf32>
      %92 = arith.addf %90, %91 : vector<8x32xf32>
      %93 = math.tanh %92 : vector<8x32xf32>
      %94 = arith.mulf %89, %93 : vector<8x32xf32>
      %c0_40 = arith.constant 0 : index
      %c0_41 = arith.constant 0 : index
      %95 = vector.load %arg7[%c0_40, %c0_41] : memref<8x32xf32, #tpu.memory_space<vmem>>, vector<8x32xf32>
      tpu.vector_store %arg7[%c0_40, %c0_41], %94 {strides = array<i32>} : memref<8x32xf32, #tpu.memory_space<vmem>>, vector<8x32xf32>,
      %c0_42 = arith.constant 0 : index
      %c0_43 = arith.constant 0 : index
      %96 = vector.load %arg8[%c0_42, %c0_43] : memref<8x32xf32, #tpu.memory_space<vmem>>, vector<8x32xf32>
      tpu.vector_store %arg8[%c0_42, %c0_43], %92 {strides = array<i32>} : memref<8x32xf32, #tpu.memory_space<vmem>>, vector<8x32xf32>,
    } else {
    }
    %c6_i32 = arith.constant 6 : i32
    %50 = arith.addi %13, %c6_i32 : i32
    %51 = arith.index_cast %50 : i32 to index
    %52 = memref.load %arg2[%51] : memref<8xi32, #tpu.memory_space<smem>>
    %c0_i32_25 = arith.constant 0 : i32
    %53 = arith.cmpi ne, %52, %c0_i32_25 : i32
    %54 = arith.extui %53 : i1 to i32
    %c0_i32_26 = arith.constant 0 : i32
    %55 = arith.cmpi ne, %54, %c0_i32_26 : i32
    scf.if %55 {
      %c0_30 = arith.constant 0 : index
      %c0_31 = arith.constant 0 : index
      %62 = vector.load %arg7[%c0_30, %c0_31] : memref<8x32xf32, #tpu.memory_space<vmem>>, vector<8x32xf32>
      %c0_32 = arith.constant 0 : index
      %c0_33 = arith.constant 0 : index
      %63 = vector.load %arg8[%c0_32, %c0_33] : memref<8x32xf32, #tpu.memory_space<vmem>>, vector<8x32xf32>
      %64 = arith.index_cast %c6_i32 : i32 to index
      %c0_34 = arith.constant 0 : index
      %c0_35 = arith.constant 0 : index
      %65 = vector.load %arg9[%64, %c0_34, %c0_35] : memref<8x8x128xf32, #tpu.memory_space<vmem>>, vector<1x8x128xf32>
      %66 = vector.shape_cast %65 : vector<1x8x128xf32> to vector<8x128xf32>
      %67 = arith.truncf %62 : vector<8x32xf32> to vector<8x32xbf16>
      %cst_36 = arith.constant dense<0.000000e+00> : vector<8x128xf32>
      %68 = tpu.matmul %67, %12, %cst_36 {dimension_numbers = #tpu.dot_dimension_numbers<[1], [0], [0], [1], [0, 0, 1, 1], [], []>} : vector<8x32xbf16>, vector<32x128xbf16>, vector<8x128xf32> -> vector<8x128xf32>
      %69 = arith.addf %66, %68 : vector<8x128xf32>
      %70 = vector.extract_strided_slice %69 {offsets = [0, 0], sizes = [8, 32], strides = [1, 1]} : vector<8x128xf32> to vector<8x32xf32>
      %71 = arith.negf %70 : vector<8x32xf32>
      %72 = math.exp %71 : vector<8x32xf32>
      %cst_37 = arith.constant 1.000000e+00 : f32
      %73 = vector.broadcast %cst_37 : f32 to vector<8x32xf32>
      %74 = arith.addf %73, %72 : vector<8x32xf32>
      %75 = arith.divf %73, %74 : vector<8x32xf32>
      %76 = vector.extract_strided_slice %69 {offsets = [0, 32], sizes = [8, 32], strides = [1, 1]} : vector<8x128xf32> to vector<8x32xf32>
      %77 = arith.negf %76 : vector<8x32xf32>
      %78 = math.exp %77 : vector<8x32xf32>
      %cst_38 = arith.constant 1.000000e+00 : f32
      %79 = vector.broadcast %cst_38 : f32 to vector<8x32xf32>
      %80 = arith.addf %79, %78 : vector<8x32xf32>
      %81 = arith.divf %79, %80 : vector<8x32xf32>
      %82 = vector.extract_strided_slice %69 {offsets = [0, 64], sizes = [8, 32], strides = [1, 1]} : vector<8x128xf32> to vector<8x32xf32>
      %83 = math.tanh %82 : vector<8x32xf32>
      %84 = vector.extract_strided_slice %69 {offsets = [0, 96], sizes = [8, 32], strides = [1, 1]} : vector<8x128xf32> to vector<8x32xf32>
      %85 = arith.negf %84 : vector<8x32xf32>
      %86 = math.exp %85 : vector<8x32xf32>
      %cst_39 = arith.constant 1.000000e+00 : f32
      %87 = vector.broadcast %cst_39 : f32 to vector<8x32xf32>
      %88 = arith.addf %87, %86 : vector<8x32xf32>
      %89 = arith.divf %87, %88 : vector<8x32xf32>
      %90 = arith.mulf %81, %63 : vector<8x32xf32>
      %91 = arith.mulf %75, %83 : vector<8x32xf32>
      %92 = arith.addf %90, %91 : vector<8x32xf32>
      %93 = math.tanh %92 : vector<8x32xf32>
      %94 = arith.mulf %89, %93 : vector<8x32xf32>
      %c0_40 = arith.constant 0 : index
      %c0_41 = arith.constant 0 : index
      %95 = vector.load %arg7[%c0_40, %c0_41] : memref<8x32xf32, #tpu.memory_space<vmem>>, vector<8x32xf32>
      tpu.vector_store %arg7[%c0_40, %c0_41], %94 {strides = array<i32>} : memref<8x32xf32, #tpu.memory_space<vmem>>, vector<8x32xf32>,
      %c0_42 = arith.constant 0 : index
      %c0_43 = arith.constant 0 : index
      %96 = vector.load %arg8[%c0_42, %c0_43] : memref<8x32xf32, #tpu.memory_space<vmem>>, vector<8x32xf32>
      tpu.vector_store %arg8[%c0_42, %c0_43], %92 {strides = array<i32>} : memref<8x32xf32, #tpu.memory_space<vmem>>, vector<8x32xf32>,
    } else {
    }
    %c7_i32 = arith.constant 7 : i32
    %56 = arith.addi %13, %c7_i32 : i32
    %57 = arith.index_cast %56 : i32 to index
    %58 = memref.load %arg2[%57] : memref<8xi32, #tpu.memory_space<smem>>
    %c0_i32_27 = arith.constant 0 : i32
    %59 = arith.cmpi ne, %58, %c0_i32_27 : i32
    %60 = arith.extui %59 : i1 to i32
    %c0_i32_28 = arith.constant 0 : i32
    %61 = arith.cmpi ne, %60, %c0_i32_28 : i32
    scf.if %61 {
      %c0_30 = arith.constant 0 : index
      %c0_31 = arith.constant 0 : index
      %62 = vector.load %arg7[%c0_30, %c0_31] : memref<8x32xf32, #tpu.memory_space<vmem>>, vector<8x32xf32>
      %c0_32 = arith.constant 0 : index
      %c0_33 = arith.constant 0 : index
      %63 = vector.load %arg8[%c0_32, %c0_33] : memref<8x32xf32, #tpu.memory_space<vmem>>, vector<8x32xf32>
      %64 = arith.index_cast %c7_i32 : i32 to index
      %c0_34 = arith.constant 0 : index
      %c0_35 = arith.constant 0 : index
      %65 = vector.load %arg9[%64, %c0_34, %c0_35] : memref<8x8x128xf32, #tpu.memory_space<vmem>>, vector<1x8x128xf32>
      %66 = vector.shape_cast %65 : vector<1x8x128xf32> to vector<8x128xf32>
      %67 = arith.truncf %62 : vector<8x32xf32> to vector<8x32xbf16>
      %cst_36 = arith.constant dense<0.000000e+00> : vector<8x128xf32>
      %68 = tpu.matmul %67, %12, %cst_36 {dimension_numbers = #tpu.dot_dimension_numbers<[1], [0], [0], [1], [0, 0, 1, 1], [], []>} : vector<8x32xbf16>, vector<32x128xbf16>, vector<8x128xf32> -> vector<8x128xf32>
      %69 = arith.addf %66, %68 : vector<8x128xf32>
      %70 = vector.extract_strided_slice %69 {offsets = [0, 0], sizes = [8, 32], strides = [1, 1]} : vector<8x128xf32> to vector<8x32xf32>
      %71 = arith.negf %70 : vector<8x32xf32>
      %72 = math.exp %71 : vector<8x32xf32>
      %cst_37 = arith.constant 1.000000e+00 : f32
      %73 = vector.broadcast %cst_37 : f32 to vector<8x32xf32>
      %74 = arith.addf %73, %72 : vector<8x32xf32>
      %75 = arith.divf %73, %74 : vector<8x32xf32>
      %76 = vector.extract_strided_slice %69 {offsets = [0, 32], sizes = [8, 32], strides = [1, 1]} : vector<8x128xf32> to vector<8x32xf32>
      %77 = arith.negf %76 : vector<8x32xf32>
      %78 = math.exp %77 : vector<8x32xf32>
      %cst_38 = arith.constant 1.000000e+00 : f32
      %79 = vector.broadcast %cst_38 : f32 to vector<8x32xf32>
      %80 = arith.addf %79, %78 : vector<8x32xf32>
      %81 = arith.divf %79, %80 : vector<8x32xf32>
      %82 = vector.extract_strided_slice %69 {offsets = [0, 64], sizes = [8, 32], strides = [1, 1]} : vector<8x128xf32> to vector<8x32xf32>
      %83 = math.tanh %82 : vector<8x32xf32>
      %84 = vector.extract_strided_slice %69 {offsets = [0, 96], sizes = [8, 32], strides = [1, 1]} : vector<8x128xf32> to vector<8x32xf32>
      %85 = arith.negf %84 : vector<8x32xf32>
      %86 = math.exp %85 : vector<8x32xf32>
      %cst_39 = arith.constant 1.000000e+00 : f32
      %87 = vector.broadcast %cst_39 : f32 to vector<8x32xf32>
      %88 = arith.addf %87, %86 : vector<8x32xf32>
      %89 = arith.divf %87, %88 : vector<8x32xf32>
      %90 = arith.mulf %81, %63 : vector<8x32xf32>
      %91 = arith.mulf %75, %83 : vector<8x32xf32>
      %92 = arith.addf %90, %91 : vector<8x32xf32>
      %93 = math.tanh %92 : vector<8x32xf32>
      %94 = arith.mulf %89, %93 : vector<8x32xf32>
      %c0_40 = arith.constant 0 : index
      %c0_41 = arith.constant 0 : index
      %95 = vector.load %arg7[%c0_40, %c0_41] : memref<8x32xf32, #tpu.memory_space<vmem>>, vector<8x32xf32>
      tpu.vector_store %arg7[%c0_40, %c0_41], %94 {strides = array<i32>} : memref<8x32xf32, #tpu.memory_space<vmem>>, vector<8x32xf32>,
      %c0_42 = arith.constant 0 : index
      %c0_43 = arith.constant 0 : index
      %96 = vector.load %arg8[%c0_42, %c0_43] : memref<8x32xf32, #tpu.memory_space<vmem>>, vector<8x32xf32>
      tpu.vector_store %arg8[%c0_42, %c0_43], %92 {strides = array<i32>} : memref<8x32xf32, #tpu.memory_space<vmem>>, vector<8x32xf32>,
    } else {
    }
    %c8_i32_29 = arith.constant 8 : i32
    return
  }
  func.func @transform_0(%arg0: i32, %arg1: i32, %arg2: memref<8xi32, #tpu.memory_space<smem>>) -> (i32, i32, i32) {
    %c0_i32 = arith.constant 0 : i32
    %c0_i32_0 = arith.constant 0 : i32
    return %arg1, %arg0, %c0_i32 : i32, i32, i32
  }
  func.func @transform_1(%arg0: i32, %arg1: i32, %arg2: memref<8xi32, #tpu.memory_space<smem>>) -> (i32, i32) {
    %c0_i32 = arith.constant 0 : i32
    %c0_i32_0 = arith.constant 0 : i32
    %c0_i32_1 = arith.constant 0 : i32
    return %c0_i32, %c0_i32_0 : i32, i32
  }
  func.func @transform_2(%arg0: i32, %arg1: i32, %arg2: memref<8xi32, #tpu.memory_space<smem>>) -> (i32, i32) {
    %c0_i32 = arith.constant 0 : i32
    %c0_i32_0 = arith.constant 0 : i32
    %c0_i32_1 = arith.constant 0 : i32
    return %c0_i32, %c0_i32_0 : i32, i32
  }
  func.func @transform_3(%arg0: i32, %arg1: i32, %arg2: memref<8xi32, #tpu.memory_space<smem>>) -> (i32, i32) {
    %c0_i32 = arith.constant 0 : i32
    %c0_i32_0 = arith.constant 0 : i32
    %c0_i32_1 = arith.constant 0 : i32
    return %c0_i32, %c0_i32_0 : i32, i32
  }
  func.func @transform_4(%arg0: i32, %arg1: i32, %arg2: memref<8xi32, #tpu.memory_space<smem>>) -> (i32, i32) {
    %c0_i32 = arith.constant 0 : i32
    %c0_i32_0 = arith.constant 0 : i32
    return %arg0, %c0_i32 : i32, i32
  }
  func.func @transform_5(%arg0: i32, %arg1: i32, %arg2: memref<8xi32, #tpu.memory_space<smem>>) -> (i32, i32) {
    %c0_i32 = arith.constant 0 : i32
    %c0_i32_0 = arith.constant 0 : i32
    return %arg0, %c0_i32 : i32, i32
  }
}

</mosaic_0001>

<llo_original>
// kernel: tpu_custom_call.1
$region0: #{tpu_custom_call.1}
  #allocation0 [shape = 'u32[]', space=smem, size = 0x4, offset = 0x4, fixed_abs, tag = 'smem constant byte address 0x4 - core index']
  #allocation1 [shape = 'u32[144,128]{1,0:T(1,128)}', space=vmem, size = 0x12000, scoped, tag = 'internal scratch']
  #allocation2 [shape = 'f32[8,8,128]{2,1,0:T(8,128)}', space=vmem, size = 0x8000, scoped, tag = 'scratch operand']
  #allocation3 [shape = 's32[1]{0}', space=sflag, size = 0x4, scoped, tag = 'scoped memory for tpu_custom_call.1']
  #allocation4 [shape = 'u8[512]{0}', space=smem, size = 0x200, scoped, tag = 'prefetched SMEM operand 0']
  %s0 = inlined_call_operand.hbm [shape: s32[8], index: 0, kind: input, shape index: {}]
  %s1 = inlined_call_operand.hbm [shape: bf16[8,8,32], index: 1, kind: input, shape index: {}]
  %s2 = inlined_call_operand.hbm [shape: bf16[32,128], index: 2, kind: input, shape index: {}]
  %s3 = inlined_call_operand.hbm [shape: bf16[32,128], index: 3, kind: input, shape index: {}]
  %s4 = inlined_call_operand.vmem [shape: f32[1,128], index: 4, kind: input, shape index: {}]
  %s5 = inlined_call_operand.hbm [shape: f32[8,32], index: 5, kind: output, shape index: {0}]
  %s6 = inlined_call_operand.hbm [shape: f32[8,32], index: 6, kind: output, shape index: {1}]
  %7 = xla_tuple %s5, %s6
  %s8 = sld [smem:[#allocation0]]
  $region82: #{tpu_custom_call.1} parent=0
    _
  %s10 = ssub.s32 1, %s8
  %s11 = scalar_select 0, %s10, %s8
  %13 = dma.hbm_to_smem %s0, 16, [#allocation4], [#allocation3]
  %14 = dma.done [#allocation3], 16
  %15 = sfence
  $region1: #{tpu_custom_call.1} parent=0
    #allocation5 [shape = 'u8[16384]{0}', space=vmem, size = 0x4000, scoped, tag = 'input window, operand 1, single buffered']
    #allocation6 [shape = 's32[1]{0}', space=sflag, size = 0x4, scoped, tag = 'scoped memory for tpu_custom_call.1']
    #allocation7 [shape = 's32[1]{0}', space=sflag, size = 0x4, scoped, tag = 'scoped memory for tpu_custom_call.1']
    #allocation8 [shape = 'u8[8192]{0}', space=vmem, size = 0x2000, scoped, tag = 'input window, operand 2, single buffered']
    #allocation9 [shape = 's32[1]{0}', space=sflag, size = 0x4, scoped, tag = 'scoped memory for tpu_custom_call.1']
    #allocation10 [shape = 'u8[8192]{0}', space=vmem, size = 0x2000, scoped, tag = 'input window, operand 3, single buffered']
    #allocation11 [shape = 'u8[4096]{0}', space=vmem, size = 0x1000, scoped, tag = 'output window, operand 0, single buffered']
    #allocation12 [shape = 'u8[4096]{0}', space=vmem, size = 0x1000, scoped, tag = 'output window, operand 1, single buffered']
    #allocation13 [shape = 's32[1]{0}', space=sflag, size = 0x4, scoped, tag = 'scoped memory for tpu_custom_call.1']
    %16 = vsyncpa [#allocation6], 0
    %17 = vsyncpa [#allocation9], 0
    %18 = vsyncpa [#allocation7], 0
    %19 = vsyncpa [#allocation13], 0
    // Predicated region
    $region2: #{tpu_custom_call.1} parent=1 // pred_check
      _
    $region3: #{tpu_custom_call.1} parent=1 // pred_check_branch
      %21 = sbr.rel (0) target = $region5
    $region4: #{tpu_custom_call.1} parent=1 // pred_region
      %s23 = ssub.s32 512, 512
      %24 = vsyncadd [#allocation6], %s23
      %s25 = sshll.u32 [#allocation5], 4
      %s26 = int_to_ptr.vmem [resolvable:$true] %s25
      %31 = dma.hbm_to_vmem [thread:$0]  %s1, 512, %s26, [#allocation6], 64, 64, 4
    $region5: #{tpu_custom_call.1} parent=1 // pred_fallthru
      _
    // Predicated region
    $region6: #{tpu_custom_call.1} parent=1 // pred_check
      _
    $region7: #{tpu_custom_call.1} parent=1 // pred_check_branch
      %33 = sbr.rel (0) target = $region9
    $region8: #{tpu_custom_call.1} parent=1 // pred_region
      %s35 = ssub.s32 256, 256
      %36 = vsyncadd [#allocation9], %s35
      %s37 = sshll.u32 [#allocation8], 4
      %s38 = int_to_ptr.vmem [resolvable:$true] %s37
      %43 = dma.hbm_to_vmem [thread:$0]  %s2, 256, %s38, [#allocation9], 64, 64, 4
    $region9: #{tpu_custom_call.1} parent=1 // pred_fallthru
      _
    // Predicated region
    $region10: #{tpu_custom_call.1} parent=1 // pred_check
      _
    $region11: #{tpu_custom_call.1} parent=1 // pred_check_branch
      %45 = sbr.rel (0) target = $region13
    $region12: #{tpu_custom_call.1} parent=1 // pred_region
      %s47 = ssub.s32 256, 256
      %48 = vsyncadd [#allocation9], %s47
      %s49 = sshll.u32 [#allocation10], 4
      %s50 = int_to_ptr.vmem [resolvable:$true] %s49
      %55 = dma.hbm_to_vmem [thread:$0]  %s3, 256, %s50, [#allocation9], 64, 64, 4
    $region13: #{tpu_custom_call.1} parent=1 // pred_fallthru
      _
    // Predicated region
    $region14: #{tpu_custom_call.1} parent=1 // pred_check
      _
    $region15: #{tpu_custom_call.1} parent=1 // pred_check_branch
      %57 = sbr.rel (0) target = $region17
    $region16: #{tpu_custom_call.1} parent=1 // pred_region
      _
    $region17: #{tpu_custom_call.1} parent=1 // pred_fallthru
      _
    // Predicated region
    $region18: #{tpu_custom_call.1} parent=1 // pred_check
      _
    $region19: #{tpu_custom_call.1} parent=1 // pred_check_branch
      %59 = sbr.rel (0) target = $region21
    $region20: #{tpu_custom_call.1} parent=1 // pred_region
      %60 = dma.done [#allocation6], 512
    $region21: #{tpu_custom_call.1} parent=1 // pred_fallthru
      _
    // Predicated region
    $region22: #{tpu_custom_call.1} parent=1 // pred_check
      _
    $region23: #{tpu_custom_call.1} parent=1 // pred_check_branch
      %62 = sbr.rel (0) target = $region25
    $region24: #{tpu_custom_call.1} parent=1 // pred_region
      %63 = dma.done [#allocation9], 256
    $region25: #{tpu_custom_call.1} parent=1 // pred_fallthru
      _
    // Predicated region
    $region26: #{tpu_custom_call.1} parent=1 // pred_check
      _
    $region27: #{tpu_custom_call.1} parent=1 // pred_check_branch
      %65 = sbr.rel (0) target = $region29
    $region28: #{tpu_custom_call.1} parent=1 // pred_region
      %66 = dma.done [#allocation9], 256
    $region29: #{tpu_custom_call.1} parent=1 // pred_fallthru
      _
    %p68 = scmp.eq.s32.totalorder 0, 0
    // Predicated region
    $region30: #{tpu_custom_call.1} parent=1 // pred_check
      %p69 = pneg %p68
    $region31: #{tpu_custom_call.1} parent=1 // pred_check_branch
      %71 = sbr.rel (%p69) target = $region33
    $region32: #{tpu_custom_call.1} parent=1 // pred_region
      %vm72 = vcmask 261120
      %73 = vst.msk [vmem:[#allocation11] sm:$0xff] %vm72, 0.0
      %74 = vst.msk [vmem:[#allocation12] sm:$0xff] %vm72, 0.0
    $region33: #{tpu_custom_call.1} parent=1 // pred_fallthru
      _
    %v75 = vld [vmem:[#allocation5] sm:$0xf]
    %v76 = vld [vmem:[#allocation5 + $0x4] sm:$0xf]
    %v77 = vld [vmem:[#allocation5 + $0x8] sm:$0xf]
    %v78 = vld [vmem:[#allocation5 + $0xc] sm:$0xf]
    %v79 = vld [vmem:[#allocation5 + $0x10] sm:$0xf]
    %v80 = vld [vmem:[#allocation5 + $0x14] sm:$0xf]
    %v81 = vld [vmem:[#allocation5 + $0x18] sm:$0xf]
    %v82 = vld [vmem:[#allocation5 + $0x1c] sm:$0xf]
    %v83 = vld [vmem:[#allocation8] sm:$0xf]
    %v84 = vld [vmem:[#allocation8 + $0x4] sm:$0xf]
    %v85 = vld [vmem:[#allocation8 + $0x8] sm:$0xf]
    %v86 = vld [vmem:[#allocation8 + $0xc] sm:$0xf]
    %v87 = vld [vmem:[%s4] sm:$0x1]
    %v89 = vlaneseq
    %v90 = vshrl.u32 %v89, 7
    %v91 = vsub.s32 0, %v90
    %v92 = vrot.slane %v87, %v91
    %v102 = vunpack.c.l.b16 %v75
    %v103 = vunpack.c.l.b16 %v76
    %v104 = vunpack.c.l.b16 %v77
    %v105 = vunpack.c.l.b16 %v78
    %v106 = vunpack.c.l.b16 %v79
    %v107 = vunpack.c.l.b16 %v80
    %v108 = vunpack.c.l.b16 %v81
    %v109 = vunpack.c.l.b16 %v82
    %v110 = vpack.c.b16 %v103, %v102
    %v111 = vpack.c.b16 %v105, %v104
    %v112 = vpack.c.b16 %v107, %v106
    %v113 = vpack.c.b16 %v109, %v108
    %v118 = vunpack.c.l.b16 %v83
    %v119 = vunpack.c.l.b16 %v84
    %v120 = vunpack.c.l.b16 %v85
    %v121 = vunpack.c.l.b16 %v86
    %v122 = vpack.c.b16 %v119, %v118
    %v123 = vpack.c.b16 %v121, %v120
    %vm126 = vcmask 261120
    %v128 = vsel %vm126, %v110, 0
    %v131 = vsel %vm126, %v111, 0
    %v134 = vsel %vm126, %v112, 0
    %v137 = vsel %vm126, %v113, 0
    %139 = vmatprep.subr.bf16.mxu0 0
    %140 = vmatpush1.bf16.msra.mxu0 %v122
    %141 = vmatprep.subr.bf16.mxu0 0
    %142 = vmatpush1.bf16.msra.mxu0 %v123
    %143 = vmatprep.subr.bf16.mxu0 0
    %144 = vmatpush1.bf16.msra.mxu0 0
    %145 = vmatprep.subr.bf16.mxu0 0
    %146 = vmatpush1.bf16.msra.mxu0 0
    %147 = vmatprep.subr.bf16.mxu0 0
    %148 = vmatpush1.bf16.msra.mxu0 0
    %149 = vmatprep.subr.bf16.mxu0 0
    %150 = vmatpush1.bf16.msra.mxu0 0
    %151 = vmatprep.subr.bf16.mxu0 0
    %152 = vmatpush1.bf16.msra.mxu0 0
    %153 = vmatprep.subr.bf16.mxu0 0
    %154 = vmatpush1.bf16.msra.mxu0 0
    %155 = vmatprep.subr.bf16.mxu0 0
    %156 = vmatpush1.bf16.msra.mxu0 0
    %157 = vmatprep.subr.bf16.mxu0 0
    %158 = vmatpush1.bf16.msra.mxu0 0
    %159 = vmatprep.subr.bf16.mxu0 0
    %160 = vmatpush1.bf16.msra.mxu0 0
    %161 = vmatprep.subr.bf16.mxu0 0
    %162 = vmatpush1.bf16.msra.mxu0 0
    %163 = vmatprep.subr.bf16.mxu0 0
    %164 = vmatpush1.bf16.msra.mxu0 0
    %165 = vmatprep.subr.bf16.mxu0 0
    %166 = vmatpush1.bf16.msra.mxu0 0
    %167 = vmatprep.subr.bf16.mxu0 0
    %168 = vmatpush1.bf16.msra.mxu0 0
    %169 = vmatprep.subr.bf16.mxu0 0
    %170 = vmatpush1.bf16.msra.mxu0 0
    %171 = vmatprep.mubr.bf16.mxu0 0
    %172 = vmatmul.mubr.bf16.gmra.mrb[0].mxu0 %v128
    %v173 = vpop.f32.mrb[0].mxu0
    %v174 = vadd.f32 %v92, %v173
    %v175 = vpop.f32.mrb[0].mxu0
    %v176 = vpop.f32.mrb[0].mxu0
    %v177 = vadd.f32 %v92, %v176
    %v178 = vpop.f32.mrb[0].mxu0
    %179 = vmatprep.mubr.bf16.mxu0 0
    %180 = vmatmul.mubr.bf16.gmra.mrb[0].mxu0 %v131
    %v181 = vpop.f32.mrb[0].mxu0
    %v182 = vadd.f32 %v92, %v181
    %v183 = vpop.f32.mrb[0].mxu0
    %v184 = vpop.f32.mrb[0].mxu0
    %v185 = vadd.f32 %v92, %v184
    %v186 = vpop.f32.mrb[0].mxu0
    %187 = vmatprep.mubr.bf16.mxu0 0
    %188 = vmatmul.mubr.bf16.gmra.mrb[0].mxu0 %v134
    %v189 = vpop.f32.mrb[0].mxu0
    %v190 = vadd.f32 %v92, %v189
    %v191 = vpop.f32.mrb[0].mxu0
    %v192 = vpop.f32.mrb[0].mxu0
    %v193 = vadd.f32 %v92, %v192
    %v194 = vpop.f32.mrb[0].mxu0
    %195 = vmatprep.mubr.bf16.mxu0 0
    %196 = vmatmul.mubr.bf16.gmra.mrb[0].mxu0 %v137
    %v197 = vpop.f32.mrb[0].mxu0
    %v198 = vadd.f32 %v92, %v197
    %v199 = vpop.f32.mrb[0].mxu0
    %v200 = vpop.f32.mrb[0].mxu0
    %v201 = vadd.f32 %v92, %v200
    %v202 = vpop.f32.mrb[0].mxu0
    %203 = vdwg.mxu0
    %204 = vst [vmem:[#allocation2] sm:$0xff] %v174
    %205 = vst [vmem:[#allocation2 + $0x8] sm:$0xff] %v177
    %206 = vst [vmem:[#allocation2 + $0x10] sm:$0xff] %v182
    %207 = vst [vmem:[#allocation2 + $0x18] sm:$0xff] %v185
    %208 = vst [vmem:[#allocation2 + $0x20] sm:$0xff] %v190
    %209 = vst [vmem:[#allocation2 + $0x28] sm:$0xff] %v193
    %210 = vst [vmem:[#allocation2 + $0x30] sm:$0xff] %v198
    %211 = vst [vmem:[#allocation2 + $0x38] sm:$0xff] %v201
    %v212 = vld [vmem:[#allocation10] sm:$0xf]
    %v213 = vld [vmem:[#allocation10 + $0x4] sm:$0xf]
    %v214 = vld [vmem:[#allocation10 + $0x8] sm:$0xf]
    %v215 = vld [vmem:[#allocation10 + $0xc] sm:$0xf]
    %s216 = smul.u32 0, 8
    %s217 = sld [smem:[#allocation4 + %s216]]
    %p218 = scmp.ne.s32.totalorder %s217, 0
    // Predicated region
    $region34: #{tpu_custom_call.1} parent=1 // pred_check
      %p219 = pneg %p218
    $region35: #{tpu_custom_call.1} parent=1 // pred_check_branch
      %221 = sbr.rel (%p219) target = $region37
    $region36: #{tpu_custom_call.1} parent=1 // pred_region
      %v222 = vld [vmem:[#allocation11] sm:$0xff]
      %v223 = vld [vmem:[#allocation12] sm:$0xff]
      %v224 = vld [vmem:[#allocation2] sm:$0xff]
      %v225 = vpack.c.bf16 %v222, %v222
      %v230 = vunpack.c.l.b16 %v212
      %v231 = vunpack.c.l.b16 %v213
      %v232 = vunpack.c.l.b16 %v214
      %v233 = vunpack.c.l.b16 %v215
      %v234 = vpack.c.b16 %v231, %v230
      %v235 = vpack.c.b16 %v233, %v232
      %v239 = vsel %vm126, %v225, 0
      %241 = vmatprep.subr.bf16.mxu0 0
      %242 = vmatpush1.bf16.msra.mxu0 %v234
      %243 = vmatprep.subr.bf16.mxu0 0
      %244 = vmatpush1.bf16.msra.mxu0 %v235
      %245 = vmatprep.subr.bf16.mxu0 0
      %246 = vmatpush1.bf16.msra.mxu0 0
      %247 = vmatprep.subr.bf16.mxu0 0
      %248 = vmatpush1.bf16.msra.mxu0 0
      %249 = vmatprep.subr.bf16.mxu0 0
      %250 = vmatpush1.bf16.msra.mxu0 0
      %251 = vmatprep.subr.bf16.mxu0 0
      %252 = vmatpush1.bf16.msra.mxu0 0
      %253 = vmatprep.subr.bf16.mxu0 0
      %254 = vmatpush1.bf16.msra.mxu0 0
      %255 = vmatprep.subr.bf16.mxu0 0
      %256 = vmatpush1.bf16.msra.mxu0 0
      %257 = vmatprep.subr.bf16.mxu0 0
      %258 = vmatpush1.bf16.msra.mxu0 0
      %259 = vmatprep.subr.bf16.mxu0 0
      %260 = vmatpush1.bf16.msra.mxu0 0
      %261 = vmatprep.subr.bf16.mxu0 0
      %262 = vmatpush1.bf16.msra.mxu0 0
      %263 = vmatprep.subr.bf16.mxu0 0
      %264 = vmatpush1.bf16.msra.mxu0 0
      %265 = vmatprep.subr.bf16.mxu0 0
      %266 = vmatpush1.bf16.msra.mxu0 0
      %267 = vmatprep.subr.bf16.mxu0 0
      %268 = vmatpush1.bf16.msra.mxu0 0
      %269 = vmatprep.subr.bf16.mxu0 0
      %270 = vmatpush1.bf16.msra.mxu0 0
      %271 = vmatprep.subr.bf16.mxu0 0
      %272 = vmatpush1.bf16.msra.mxu0 0
      %273 = vmatprep.mubr.bf16.mxu0 0
      %274 = vmatmul.mubr.bf16.gmra.mrb[0].mxu0 %v239
      %v275 = vpop.f32.mrb[0].mxu0
      %v276 = vadd.f32 0.0, %v275
      %v277 = vpop.f32.mrb[0].mxu0
      %v278 = vpop.f32.mrb[0].mxu0
      %v279 = vpop.f32.mrb[0].mxu0
      %280 = vdwg.mxu0
      %v281 = vadd.f32 %v224, %v276
      %v282 = vxor.u32 %v281, 2147483648
      %v283 = vmul.f32 %v282, 1.442695
      %v284 = vpow.pop %v283
      %v285 = vadd.f32 %v284, 1.0
      %v286 = vrcp.pop %v285
      %v287 = vmul.f32 1.0, %v286
      %v288 = vtanh.pop %v281
      %290 = vrot.lane.b32.xlu0 %v223, 32
      %v291 = vpop.permute.xlu0 %290
      %v293 = vmul.f32 %v287, %v291
      %295 = vrot.lane.b32.xlu0 %v288, 64
      %v296 = vpop.permute.xlu0 %295
      %v298 = vmul.f32 %v287, %v296
      %300 = vrot.lane.b32.xlu0 %v298, 32
      %v301 = vpop.permute.xlu0 %300
      %v303 = vadd.f32 %v293, %v301
      %v304 = vtanh.pop %v303
      %306 = vrot.lane.b32.xlu0 %v304, 64
      %v307 = vpop.permute.xlu0 %306
      %v309 = vmul.f32 %v287, %v307
      %311 = vrot.lane.b32.xlu0 %v309, 32
      %v312 = vpop.permute.xlu0 %311
      %314 = vst.msk [vmem:[#allocation11] sm:$0xff] %vm126, %v312
      %316 = vrot.lane.b32.xlu0 %v303, 96
      %v317 = vpop.permute.xlu0 %316
      %319 = vst.msk [vmem:[#allocation12] sm:$0xff] %vm126, %v317
    $region37: #{tpu_custom_call.1} parent=1 // pred_fallthru
      _
    %s320 = sadd.s32 %s216, 1
    %s321 = sld [smem:[#allocation4 + %s320]]
    %p322 = scmp.ne.s32.totalorder %s321, 0
    // Predicated region
    $region38: #{tpu_custom_call.1} parent=1 // pred_check
      %p323 = pneg %p322
    $region39: #{tpu_custom_call.1} parent=1 // pred_check_branch
      %325 = sbr.rel (%p323) target = $region41
    $region40: #{tpu_custom_call.1} parent=1 // pred_region
      %v326 = vld [vmem:[#allocation11] sm:$0xff]
      %v327 = vld [vmem:[#allocation12] sm:$0xff]
      %s328 = scalar_lea.vmem [#allocation2], 8
      %v329 = vld [vmem:[%s328] sm:$0xff]
      %v330 = vpack.c.bf16 %v326, %v326
      %v335 = vunpack.c.l.b16 %v212
      %v336 = vunpack.c.l.b16 %v213
      %v337 = vunpack.c.l.b16 %v214
      %v338 = vunpack.c.l.b16 %v215
      %v339 = vpack.c.b16 %v336, %v335
      %v340 = vpack.c.b16 %v338, %v337
      %v344 = vsel %vm126, %v330, 0
      %346 = vmatprep.subr.bf16.mxu0 0
      %347 = vmatpush1.bf16.msra.mxu0 %v339
      %348 = vmatprep.subr.bf16.mxu0 0
      %349 = vmatpush1.bf16.msra.mxu0 %v340
      %350 = vmatprep.subr.bf16.mxu0 0
      %351 = vmatpush1.bf16.msra.mxu0 0
      %352 = vmatprep.subr.bf16.mxu0 0
      %353 = vmatpush1.bf16.msra.mxu0 0
      %354 = vmatprep.subr.bf16.mxu0 0
      %355 = vmatpush1.bf16.msra.mxu0 0
      %356 = vmatprep.subr.bf16.mxu0 0
      %357 = vmatpush1.bf16.msra.mxu0 0
      %358 = vmatprep.subr.bf16.mxu0 0
      %359 = vmatpush1.bf16.msra.mxu0 0
      %360 = vmatprep.subr.bf16.mxu0 0
      %361 = vmatpush1.bf16.msra.mxu0 0
      %362 = vmatprep.subr.bf16.mxu0 0
      %363 = vmatpush1.bf16.msra.mxu0 0
      %364 = vmatprep.subr.bf16.mxu0 0
      %365 = vmatpush1.bf16.msra.mxu0 0
      %366 = vmatprep.subr.bf16.mxu0 0
      %367 = vmatpush1.bf16.msra.mxu0 0
      %368 = vmatprep.subr.bf16.mxu0 0
      %369 = vmatpush1.bf16.msra.mxu0 0
      %370 = vmatprep.subr.bf16.mxu0 0
      %371 = vmatpush1.bf16.msra.mxu0 0
      %372 = vmatprep.subr.bf16.mxu0 0
      %373 = vmatpush1.bf16.msra.mxu0 0
      %374 = vmatprep.subr.bf16.mxu0 0
      %375 = vmatpush1.bf16.msra.mxu0 0
      %376 = vmatprep.subr.bf16.mxu0 0
      %377 = vmatpush1.bf16.msra.mxu0 0
      %378 = vmatprep.mubr.bf16.mxu0 0
      %379 = vmatmul.mubr.bf16.gmra.mrb[0].mxu0 %v344
      %v380 = vpop.f32.mrb[0].mxu0
      %v381 = vadd.f32 0.0, %v380
      %v382 = vpop.f32.mrb[0].mxu0
      %v383 = vpop.f32.mrb[0].mxu0
      %v384 = vpop.f32.mrb[0].mxu0
      %385 = vdwg.mxu0
      %v386 = vadd.f32 %v329, %v381
      %v387 = vxor.u32 %v386, 2147483648
      %v388 = vmul.f32 %v387, 1.442695
      %v389 = vpow.pop %v388
      %v390 = vadd.f32 %v389, 1.0
      %v391 = vrcp.pop %v390
      %v392 = vmul.f32 1.0, %v391
      %v393 = vtanh.pop %v386
      %395 = vrot.lane.b32.xlu0 %v327, 32
      %v396 = vpop.permute.xlu0 %395
      %v398 = vmul.f32 %v392, %v396
      %400 = vrot.lane.b32.xlu0 %v393, 64
      %v401 = vpop.permute.xlu0 %400
      %v403 = vmul.f32 %v392, %v401
      %405 = vrot.lane.b32.xlu0 %v403, 32
      %v406 = vpop.permute.xlu0 %405
      %v408 = vadd.f32 %v398, %v406
      %v409 = vtanh.pop %v408
      %411 = vrot.lane.b32.xlu0 %v409, 64
      %v412 = vpop.permute.xlu0 %411
      %v414 = vmul.f32 %v392, %v412
      %416 = vrot.lane.b32.xlu0 %v414, 32
      %v417 = vpop.permute.xlu0 %416
      %419 = vst.msk [vmem:[#allocation11] sm:$0xff] %vm126, %v417
      %421 = vrot.lane.b32.xlu0 %v408, 96
      %v422 = vpop.permute.xlu0 %421
      %424 = vst.msk [vmem:[#allocation12] sm:$0xff] %vm126, %v422
    $region41: #{tpu_custom_call.1} parent=1 // pred_fallthru
      _
    %s425 = sadd.s32 %s216, 2
    %s426 = sld [smem:[#allocation4 + %s425]]
    %p427 = scmp.ne.s32.totalorder %s426, 0
    // Predicated region
    $region42: #{tpu_custom_call.1} parent=1 // pred_check
      %p428 = pneg %p427
    $region43: #{tpu_custom_call.1} parent=1 // pred_check_branch
      %430 = sbr.rel (%p428) target = $region45
    $region44: #{tpu_custom_call.1} parent=1 // pred_region
      %v431 = vld [vmem:[#allocation11] sm:$0xff]
      %v432 = vld [vmem:[#allocation12] sm:$0xff]
      %s433 = scalar_lea.vmem [#allocation2], 16
      %v434 = vld [vmem:[%s433] sm:$0xff]
      %v435 = vpack.c.bf16 %v431, %v431
      %v440 = vunpack.c.l.b16 %v212
      %v441 = vunpack.c.l.b16 %v213
      %v442 = vunpack.c.l.b16 %v214
      %v443 = vunpack.c.l.b16 %v215
      %v444 = vpack.c.b16 %v441, %v440
      %v445 = vpack.c.b16 %v443, %v442
      %v449 = vsel %vm126, %v435, 0
      %451 = vmatprep.subr.bf16.mxu0 0
      %452 = vmatpush1.bf16.msra.mxu0 %v444
      %453 = vmatprep.subr.bf16.mxu0 0
      %454 = vmatpush1.bf16.msra.mxu0 %v445
      %455 = vmatprep.subr.bf16.mxu0 0
      %456 = vmatpush1.bf16.msra.mxu0 0
      %457 = vmatprep.subr.bf16.mxu0 0
      %458 = vmatpush1.bf16.msra.mxu0 0
      %459 = vmatprep.subr.bf16.mxu0 0
      %460 = vmatpush1.bf16.msra.mxu0 0
      %461 = vmatprep.subr.bf16.mxu0 0
      %462 = vmatpush1.bf16.msra.mxu0 0
      %463 = vmatprep.subr.bf16.mxu0 0
      %464 = vmatpush1.bf16.msra.mxu0 0
      %465 = vmatprep.subr.bf16.mxu0 0
      %466 = vmatpush1.bf16.msra.mxu0 0
      %467 = vmatprep.subr.bf16.mxu0 0
      %468 = vmatpush1.bf16.msra.mxu0 0
      %469 = vmatprep.subr.bf16.mxu0 0
      %470 = vmatpush1.bf16.msra.mxu0 0
      %471 = vmatprep.subr.bf16.mxu0 0
      %472 = vmatpush1.bf16.msra.mxu0 0
      %473 = vmatprep.subr.bf16.mxu0 0
      %474 = vmatpush1.bf16.msra.mxu0 0
      %475 = vmatprep.subr.bf16.mxu0 0
      %476 = vmatpush1.bf16.msra.mxu0 0
      %477 = vmatprep.subr.bf16.mxu0 0
      %478 = vmatpush1.bf16.msra.mxu0 0
      %479 = vmatprep.subr.bf16.mxu0 0
      %480 = vmatpush1.bf16.msra.mxu0 0
      %481 = vmatprep.subr.bf16.mxu0 0
      %482 = vmatpush1.bf16.msra.mxu0 0
      %483 = vmatprep.mubr.bf16.mxu0 0
      %484 = vmatmul.mubr.bf16.gmra.mrb[0].mxu0 %v449
      %v485 = vpop.f32.mrb[0].mxu0
      %v486 = vadd.f32 0.0, %v485
      %v487 = vpop.f32.mrb[0].mxu0
      %v488 = vpop.f32.mrb[0].mxu0
      %v489 = vpop.f32.mrb[0].mxu0
      %490 = vdwg.mxu0
      %v491 = vadd.f32 %v434, %v486
      %v492 = vxor.u32 %v491, 2147483648
      %v493 = vmul.f32 %v492, 1.442695
      %v494 = vpow.pop %v493
      %v495 = vadd.f32 %v494, 1.0
      %v496 = vrcp.pop %v495
      %v497 = vmul.f32 1.0, %v496
      %v498 = vtanh.pop %v491
      %500 = vrot.lane.b32.xlu0 %v432, 32
      %v501 = vpop.permute.xlu0 %500
      %v503 = vmul.f32 %v497, %v501
      %505 = vrot.lane.b32.xlu0 %v498, 64
      %v506 = vpop.permute.xlu0 %505
      %v508 = vmul.f32 %v497, %v506
      %510 = vrot.lane.b32.xlu0 %v508, 32
      %v511 = vpop.permute.xlu0 %510
      %v513 = vadd.f32 %v503, %v511
      %v514 = vtanh.pop %v513
      %516 = vrot.lane.b32.xlu0 %v514, 64
      %v517 = vpop.permute.xlu0 %516
      %v519 = vmul.f32 %v497, %v517
      %521 = vrot.lane.b32.xlu0 %v519, 32
      %v522 = vpop.permute.xlu0 %521
      %524 = vst.msk [vmem:[#allocation11] sm:$0xff] %vm126, %v522
      %526 = vrot.lane.b32.xlu0 %v513, 96
      %v527 = vpop.permute.xlu0 %526
      %529 = vst.msk [vmem:[#allocation12] sm:$0xff] %vm126, %v527
    $region45: #{tpu_custom_call.1} parent=1 // pred_fallthru
      _
    %s530 = sadd.s32 %s216, 3
    %s531 = sld [smem:[#allocation4 + %s530]]
    %p532 = scmp.ne.s32.totalorder %s531, 0
    // Predicated region
    $region46: #{tpu_custom_call.1} parent=1 // pred_check
      %p533 = pneg %p532
    $region47: #{tpu_custom_call.1} parent=1 // pred_check_branch
      %535 = sbr.rel (%p533) target = $region49
    $region48: #{tpu_custom_call.1} parent=1 // pred_region
      %v536 = vld [vmem:[#allocation11] sm:$0xff]
      %v537 = vld [vmem:[#allocation12] sm:$0xff]
      %s538 = scalar_lea.vmem [#allocation2], 24
      %v539 = vld [vmem:[%s538] sm:$0xff]
      %v540 = vpack.c.bf16 %v536, %v536
      %v545 = vunpack.c.l.b16 %v212
      %v546 = vunpack.c.l.b16 %v213
      %v547 = vunpack.c.l.b16 %v214
      %v548 = vunpack.c.l.b16 %v215
      %v549 = vpack.c.b16 %v546, %v545
      %v550 = vpack.c.b16 %v548, %v547
      %v554 = vsel %vm126, %v540, 0
      %556 = vmatprep.subr.bf16.mxu0 0
      %557 = vmatpush1.bf16.msra.mxu0 %v549
      %558 = vmatprep.subr.bf16.mxu0 0
      %559 = vmatpush1.bf16.msra.mxu0 %v550
      %560 = vmatprep.subr.bf16.mxu0 0
      %561 = vmatpush1.bf16.msra.mxu0 0
      %562 = vmatprep.subr.bf16.mxu0 0
      %563 = vmatpush1.bf16.msra.mxu0 0
      %564 = vmatprep.subr.bf16.mxu0 0
      %565 = vmatpush1.bf16.msra.mxu0 0
      %566 = vmatprep.subr.bf16.mxu0 0
      %567 = vmatpush1.bf16.msra.mxu0 0
      %568 = vmatprep.subr.bf16.mxu0 0
      %569 = vmatpush1.bf16.msra.mxu0 0
      %570 = vmatprep.subr.bf16.mxu0 0
      %571 = vmatpush1.bf16.msra.mxu0 0
      %572 = vmatprep.subr.bf16.mxu0 0
      %573 = vmatpush1.bf16.msra.mxu0 0
      %574 = vmatprep.subr.bf16.mxu0 0
      %575 = vmatpush1.bf16.msra.mxu0 0
      %576 = vmatprep.subr.bf16.mxu0 0
      %577 = vmatpush1.bf16.msra.mxu0 0
      %578 = vmatprep.subr.bf16.mxu0 0
      %579 = vmatpush1.bf16.msra.mxu0 0
      %580 = vmatprep.subr.bf16.mxu0 0
      %581 = vmatpush1.bf16.msra.mxu0 0
      %582 = vmatprep.subr.bf16.mxu0 0
      %583 = vmatpush1.bf16.msra.mxu0 0
      %584 = vmatprep.subr.bf16.mxu0 0
      %585 = vmatpush1.bf16.msra.mxu0 0
      %586 = vmatprep.subr.bf16.mxu0 0
      %587 = vmatpush1.bf16.msra.mxu0 0
      %588 = vmatprep.mubr.bf16.mxu0 0
      %589 = vmatmul.mubr.bf16.gmra.mrb[0].mxu0 %v554
      %v590 = vpop.f32.mrb[0].mxu0
      %v591 = vadd.f32 0.0, %v590
      %v592 = vpop.f32.mrb[0].mxu0
      %v593 = vpop.f32.mrb[0].mxu0
      %v594 = vpop.f32.mrb[0].mxu0
      %595 = vdwg.mxu0
      %v596 = vadd.f32 %v539, %v591
      %v597 = vxor.u32 %v596, 2147483648
      %v598 = vmul.f32 %v597, 1.442695
      %v599 = vpow.pop %v598
      %v600 = vadd.f32 %v599, 1.0
      %v601 = vrcp.pop %v600
      %v602 = vmul.f32 1.0, %v601
      %v603 = vtanh.pop %v596
      %605 = vrot.lane.b32.xlu0 %v537, 32
      %v606 = vpop.permute.xlu0 %605
      %v608 = vmul.f32 %v602, %v606
      %610 = vrot.lane.b32.xlu0 %v603, 64
      %v611 = vpop.permute.xlu0 %610
      %v613 = vmul.f32 %v602, %v611
      %615 = vrot.lane.b32.xlu0 %v613, 32
      %v616 = vpop.permute.xlu0 %615
      %v618 = vadd.f32 %v608, %v616
      %v619 = vtanh.pop %v618
      %621 = vrot.lane.b32.xlu0 %v619, 64
      %v622 = vpop.permute.xlu0 %621
      %v624 = vmul.f32 %v602, %v622
      %626 = vrot.lane.b32.xlu0 %v624, 32
      %v627 = vpop.permute.xlu0 %626
      %629 = vst.msk [vmem:[#allocation11] sm:$0xff] %vm126, %v627
      %631 = vrot.lane.b32.xlu0 %v618, 96
      %v632 = vpop.permute.xlu0 %631
      %634 = vst.msk [vmem:[#allocation12] sm:$0xff] %vm126, %v632
    $region49: #{tpu_custom_call.1} parent=1 // pred_fallthru
      _
    %s635 = sadd.s32 %s216, 4
    %s636 = sld [smem:[#allocation4 + %s635]]
    %p637 = scmp.ne.s32.totalorder %s636, 0
    // Predicated region
    $region50: #{tpu_custom_call.1} parent=1 // pred_check
      %p638 = pneg %p637
    $region51: #{tpu_custom_call.1} parent=1 // pred_check_branch
      %640 = sbr.rel (%p638) target = $region53
    $region52: #{tpu_custom_call.1} parent=1 // pred_region
      %v641 = vld [vmem:[#allocation11] sm:$0xff]
      %v642 = vld [vmem:[#allocation12] sm:$0xff]
      %s643 = scalar_lea.vmem [#allocation2], 32
      %v644 = vld [vmem:[%s643] sm:$0xff]
      %v645 = vpack.c.bf16 %v641, %v641
      %v650 = vunpack.c.l.b16 %v212
      %v651 = vunpack.c.l.b16 %v213
      %v652 = vunpack.c.l.b16 %v214
      %v653 = vunpack.c.l.b16 %v215
      %v654 = vpack.c.b16 %v651, %v650
      %v655 = vpack.c.b16 %v653, %v652
      %v659 = vsel %vm126, %v645, 0
      %661 = vmatprep.subr.bf16.mxu0 0
      %662 = vmatpush1.bf16.msra.mxu0 %v654
      %663 = vmatprep.subr.bf16.mxu0 0
      %664 = vmatpush1.bf16.msra.mxu0 %v655
      %665 = vmatprep.subr.bf16.mxu0 0
      %666 = vmatpush1.bf16.msra.mxu0 0
      %667 = vmatprep.subr.bf16.mxu0 0
      %668 = vmatpush1.bf16.msra.mxu0 0
      %669 = vmatprep.subr.bf16.mxu0 0
      %670 = vmatpush1.bf16.msra.mxu0 0
      %671 = vmatprep.subr.bf16.mxu0 0
      %672 = vmatpush1.bf16.msra.mxu0 0
      %673 = vmatprep.subr.bf16.mxu0 0
      %674 = vmatpush1.bf16.msra.mxu0 0
      %675 = vmatprep.subr.bf16.mxu0 0
      %676 = vmatpush1.bf16.msra.mxu0 0
      %677 = vmatprep.subr.bf16.mxu0 0
      %678 = vmatpush1.bf16.msra.mxu0 0
      %679 = vmatprep.subr.bf16.mxu0 0
      %680 = vmatpush1.bf16.msra.mxu0 0
      %681 = vmatprep.subr.bf16.mxu0 0
      %682 = vmatpush1.bf16.msra.mxu0 0
      %683 = vmatprep.subr.bf16.mxu0 0
      %684 = vmatpush1.bf16.msra.mxu0 0
      %685 = vmatprep.subr.bf16.mxu0 0
      %686 = vmatpush1.bf16.msra.mxu0 0
      %687 = vmatprep.subr.bf16.mxu0 0
      %688 = vmatpush1.bf16.msra.mxu0 0
      %689 = vmatprep.subr.bf16.mxu0 0
      %690 = vmatpush1.bf16.msra.mxu0 0
      %691 = vmatprep.subr.bf16.mxu0 0
      %692 = vmatpush1.bf16.msra.mxu0 0
      %693 = vmatprep.mubr.bf16.mxu0 0
      %694 = vmatmul.mubr.bf16.gmra.mrb[0].mxu0 %v659
      %v695 = vpop.f32.mrb[0].mxu0
      %v696 = vadd.f32 0.0, %v695
      %v697 = vpop.f32.mrb[0].mxu0
      %v698 = vpop.f32.mrb[0].mxu0
      %v699 = vpop.f32.mrb[0].mxu0
      %700 = vdwg.mxu0
      %v701 = vadd.f32 %v644, %v696
      %v702 = vxor.u32 %v701, 2147483648
      %v703 = vmul.f32 %v702, 1.442695
      %v704 = vpow.pop %v703
      %v705 = vadd.f32 %v704, 1.0
      %v706 = vrcp.pop %v705
      %v707 = vmul.f32 1.0, %v706
      %v708 = vtanh.pop %v701
      %710 = vrot.lane.b32.xlu0 %v642, 32
      %v711 = vpop.permute.xlu0 %710
      %v713 = vmul.f32 %v707, %v711
      %715 = vrot.lane.b32.xlu0 %v708, 64
      %v716 = vpop.permute.xlu0 %715
      %v718 = vmul.f32 %v707, %v716
      %720 = vrot.lane.b32.xlu0 %v718, 32
      %v721 = vpop.permute.xlu0 %720
      %v723 = vadd.f32 %v713, %v721
      %v724 = vtanh.pop %v723
      %726 = vrot.lane.b32.xlu0 %v724, 64
      %v727 = vpop.permute.xlu0 %726
      %v729 = vmul.f32 %v707, %v727
      %731 = vrot.lane.b32.xlu0 %v729, 32
      %v732 = vpop.permute.xlu0 %731
      %734 = vst.msk [vmem:[#allocation11] sm:$0xff] %vm126, %v732
      %736 = vrot.lane.b32.xlu0 %v723, 96
      %v737 = vpop.permute.xlu0 %736
      %739 = vst.msk [vmem:[#allocation12] sm:$0xff] %vm126, %v737
    $region53: #{tpu_custom_call.1} parent=1 // pred_fallthru
      _
    %s740 = sadd.s32 %s216, 5
    %s741 = sld [smem:[#allocation4 + %s740]]
    %p742 = scmp.ne.s32.totalorder %s741, 0
    // Predicated region
    $region54: #{tpu_custom_call.1} parent=1 // pred_check
      %p743 = pneg %p742
    $region55: #{tpu_custom_call.1} parent=1 // pred_check_branch
      %745 = sbr.rel (%p743) target = $region57
    $region56: #{tpu_custom_call.1} parent=1 // pred_region
      %v746 = vld [vmem:[#allocation11] sm:$0xff]
      %v747 = vld [vmem:[#allocation12] sm:$0xff]
      %s748 = scalar_lea.vmem [#allocation2], 40
      %v749 = vld [vmem:[%s748] sm:$0xff]
      %v750 = vpack.c.bf16 %v746, %v746
      %v755 = vunpack.c.l.b16 %v212
      %v756 = vunpack.c.l.b16 %v213
      %v757 = vunpack.c.l.b16 %v214
      %v758 = vunpack.c.l.b16 %v215
      %v759 = vpack.c.b16 %v756, %v755
      %v760 = vpack.c.b16 %v758, %v757
      %v764 = vsel %vm126, %v750, 0
      %766 = vmatprep.subr.bf16.mxu0 0
      %767 = vmatpush1.bf16.msra.mxu0 %v759
      %768 = vmatprep.subr.bf16.mxu0 0
      %769 = vmatpush1.bf16.msra.mxu0 %v760
      %770 = vmatprep.subr.bf16.mxu0 0
      %771 = vmatpush1.bf16.msra.mxu0 0
      %772 = vmatprep.subr.bf16.mxu0 0
      %773 = vmatpush1.bf16.msra.mxu0 0
      %774 = vmatprep.subr.bf16.mxu0 0
      %775 = vmatpush1.bf16.msra.mxu0 0
      %776 = vmatprep.subr.bf16.mxu0 0
      %777 = vmatpush1.bf16.msra.mxu0 0
      %778 = vmatprep.subr.bf16.mxu0 0
      %779 = vmatpush1.bf16.msra.mxu0 0
      %780 = vmatprep.subr.bf16.mxu0 0
      %781 = vmatpush1.bf16.msra.mxu0 0
      %782 = vmatprep.subr.bf16.mxu0 0
      %783 = vmatpush1.bf16.msra.mxu0 0
      %784 = vmatprep.subr.bf16.mxu0 0
      %785 = vmatpush1.bf16.msra.mxu0 0
      %786 = vmatprep.subr.bf16.mxu0 0
      %787 = vmatpush1.bf16.msra.mxu0 0
      %788 = vmatprep.subr.bf16.mxu0 0
      %789 = vmatpush1.bf16.msra.mxu0 0
      %790 = vmatprep.subr.bf16.mxu0 0
      %791 = vmatpush1.bf16.msra.mxu0 0
      %792 = vmatprep.subr.bf16.mxu0 0
      %793 = vmatpush1.bf16.msra.mxu0 0
      %794 = vmatprep.subr.bf16.mxu0 0
      %795 = vmatpush1.bf16.msra.mxu0 0
      %796 = vmatprep.subr.bf16.mxu0 0
      %797 = vmatpush1.bf16.msra.mxu0 0
      %798 = vmatprep.mubr.bf16.mxu0 0
      %799 = vmatmul.mubr.bf16.gmra.mrb[0].mxu0 %v764
      %v800 = vpop.f32.mrb[0].mxu0
      %v801 = vadd.f32 0.0, %v800
      %v802 = vpop.f32.mrb[0].mxu0
      %v803 = vpop.f32.mrb[0].mxu0
      %v804 = vpop.f32.mrb[0].mxu0
      %805 = vdwg.mxu0
      %v806 = vadd.f32 %v749, %v801
      %v807 = vxor.u32 %v806, 2147483648
      %v808 = vmul.f32 %v807, 1.442695
      %v809 = vpow.pop %v808
      %v810 = vadd.f32 %v809, 1.0
      %v811 = vrcp.pop %v810
      %v812 = vmul.f32 1.0, %v811
      %v813 = vtanh.pop %v806
      %815 = vrot.lane.b32.xlu0 %v747, 32
      %v816 = vpop.permute.xlu0 %815
      %v818 = vmul.f32 %v812, %v816
      %820 = vrot.lane.b32.xlu0 %v813, 64
      %v821 = vpop.permute.xlu0 %820
      %v823 = vmul.f32 %v812, %v821
      %825 = vrot.lane.b32.xlu0 %v823, 32
      %v826 = vpop.permute.xlu0 %825
      %v828 = vadd.f32 %v818, %v826
      %v829 = vtanh.pop %v828
      %831 = vrot.lane.b32.xlu0 %v829, 64
      %v832 = vpop.permute.xlu0 %831
      %v834 = vmul.f32 %v812, %v832
      %836 = vrot.lane.b32.xlu0 %v834, 32
      %v837 = vpop.permute.xlu0 %836
      %839 = vst.msk [vmem:[#allocation11] sm:$0xff] %vm126, %v837
      %841 = vrot.lane.b32.xlu0 %v828, 96
      %v842 = vpop.permute.xlu0 %841
      %844 = vst.msk [vmem:[#allocation12] sm:$0xff] %vm126, %v842
    $region57: #{tpu_custom_call.1} parent=1 // pred_fallthru
      _
    %s845 = sadd.s32 %s216, 6
    %s846 = sld [smem:[#allocation4 + %s845]]
    %p847 = scmp.ne.s32.totalorder %s846, 0
    // Predicated region
    $region58: #{tpu_custom_call.1} parent=1 // pred_check
      %p848 = pneg %p847
    $region59: #{tpu_custom_call.1} parent=1 // pred_check_branch
      %850 = sbr.rel (%p848) target = $region61
    $region60: #{tpu_custom_call.1} parent=1 // pred_region
      %v851 = vld [vmem:[#allocation11] sm:$0xff]
      %v852 = vld [vmem:[#allocation12] sm:$0xff]
      %s853 = scalar_lea.vmem [#allocation2], 48
      %v854 = vld [vmem:[%s853] sm:$0xff]
      %v855 = vpack.c.bf16 %v851, %v851
      %v860 = vunpack.c.l.b16 %v212
      %v861 = vunpack.c.l.b16 %v213
      %v862 = vunpack.c.l.b16 %v214
      %v863 = vunpack.c.l.b16 %v215
      %v864 = vpack.c.b16 %v861, %v860
      %v865 = vpack.c.b16 %v863, %v862
      %v869 = vsel %vm126, %v855, 0
      %871 = vmatprep.subr.bf16.mxu0 0
      %872 = vmatpush1.bf16.msra.mxu0 %v864
      %873 = vmatprep.subr.bf16.mxu0 0
      %874 = vmatpush1.bf16.msra.mxu0 %v865
      %875 = vmatprep.subr.bf16.mxu0 0
      %876 = vmatpush1.bf16.msra.mxu0 0
      %877 = vmatprep.subr.bf16.mxu0 0
      %878 = vmatpush1.bf16.msra.mxu0 0
      %879 = vmatprep.subr.bf16.mxu0 0
      %880 = vmatpush1.bf16.msra.mxu0 0
      %881 = vmatprep.subr.bf16.mxu0 0
      %882 = vmatpush1.bf16.msra.mxu0 0
      %883 = vmatprep.subr.bf16.mxu0 0
      %884 = vmatpush1.bf16.msra.mxu0 0
      %885 = vmatprep.subr.bf16.mxu0 0
      %886 = vmatpush1.bf16.msra.mxu0 0
      %887 = vmatprep.subr.bf16.mxu0 0
      %888 = vmatpush1.bf16.msra.mxu0 0
      %889 = vmatprep.subr.bf16.mxu0 0
      %890 = vmatpush1.bf16.msra.mxu0 0
      %891 = vmatprep.subr.bf16.mxu0 0
      %892 = vmatpush1.bf16.msra.mxu0 0
      %893 = vmatprep.subr.bf16.mxu0 0
      %894 = vmatpush1.bf16.msra.mxu0 0
      %895 = vmatprep.subr.bf16.mxu0 0
      %896 = vmatpush1.bf16.msra.mxu0 0
      %897 = vmatprep.subr.bf16.mxu0 0
      %898 = vmatpush1.bf16.msra.mxu0 0
      %899 = vmatprep.subr.bf16.mxu0 0
      %900 = vmatpush1.bf16.msra.mxu0 0
      %901 = vmatprep.subr.bf16.mxu0 0
      %902 = vmatpush1.bf16.msra.mxu0 0
      %903 = vmatprep.mubr.bf16.mxu0 0
      %904 = vmatmul.mubr.bf16.gmra.mrb[0].mxu0 %v869
      %v905 = vpop.f32.mrb[0].mxu0
      %v906 = vadd.f32 0.0, %v905
      %v907 = vpop.f32.mrb[0].mxu0
      %v908 = vpop.f32.mrb[0].mxu0
      %v909 = vpop.f32.mrb[0].mxu0
      %910 = vdwg.mxu0
      %v911 = vadd.f32 %v854, %v906
      %v912 = vxor.u32 %v911, 2147483648
      %v913 = vmul.f32 %v912, 1.442695
      %v914 = vpow.pop %v913
      %v915 = vadd.f32 %v914, 1.0
      %v916 = vrcp.pop %v915
      %v917 = vmul.f32 1.0, %v916
      %v918 = vtanh.pop %v911
      %920 = vrot.lane.b32.xlu0 %v852, 32
      %v921 = vpop.permute.xlu0 %920
      %v923 = vmul.f32 %v917, %v921
      %925 = vrot.lane.b32.xlu0 %v918, 64
      %v926 = vpop.permute.xlu0 %925
      %v928 = vmul.f32 %v917, %v926
      %930 = vrot.lane.b32.xlu0 %v928, 32
      %v931 = vpop.permute.xlu0 %930
      %v933 = vadd.f32 %v923, %v931
      %v934 = vtanh.pop %v933
      %936 = vrot.lane.b32.xlu0 %v934, 64
      %v937 = vpop.permute.xlu0 %936
      %v939 = vmul.f32 %v917, %v937
      %941 = vrot.lane.b32.xlu0 %v939, 32
      %v942 = vpop.permute.xlu0 %941
      %944 = vst.msk [vmem:[#allocation11] sm:$0xff] %vm126, %v942
      %946 = vrot.lane.b32.xlu0 %v933, 96
      %v947 = vpop.permute.xlu0 %946
      %949 = vst.msk [vmem:[#allocation12] sm:$0xff] %vm126, %v947
    $region61: #{tpu_custom_call.1} parent=1 // pred_fallthru
      _
    %s950 = sadd.s32 %s216, 7
    %s951 = sld [smem:[#allocation4 + %s950]]
    %p952 = scmp.ne.s32.totalorder %s951, 0
    // Predicated region
    $region62: #{tpu_custom_call.1} parent=1 // pred_check
      %p953 = pneg %p952
    $region63: #{tpu_custom_call.1} parent=1 // pred_check_branch
      %955 = sbr.rel (%p953) target = $region65
    $region64: #{tpu_custom_call.1} parent=1 // pred_region
      %v956 = vld [vmem:[#allocation11] sm:$0xff]
      %v957 = vld [vmem:[#allocation12] sm:$0xff]
      %s958 = scalar_lea.vmem [#allocation2], 56
      %v959 = vld [vmem:[%s958] sm:$0xff]
      %v960 = vpack.c.bf16 %v956, %v956
      %v965 = vunpack.c.l.b16 %v212
      %v966 = vunpack.c.l.b16 %v213
      %v967 = vunpack.c.l.b16 %v214
      %v968 = vunpack.c.l.b16 %v215
      %v969 = vpack.c.b16 %v966, %v965
      %v970 = vpack.c.b16 %v968, %v967
      %v974 = vsel %vm126, %v960, 0
      %976 = vmatprep.subr.bf16.mxu0 0
      %977 = vmatpush1.bf16.msra.mxu0 %v969
      %978 = vmatprep.subr.bf16.mxu0 0
      %979 = vmatpush1.bf16.msra.mxu0 %v970
      %980 = vmatprep.subr.bf16.mxu0 0
      %981 = vmatpush1.bf16.msra.mxu0 0
      %982 = vmatprep.subr.bf16.mxu0 0
      %983 = vmatpush1.bf16.msra.mxu0 0
      %984 = vmatprep.subr.bf16.mxu0 0
      %985 = vmatpush1.bf16.msra.mxu0 0
      %986 = vmatprep.subr.bf16.mxu0 0
      %987 = vmatpush1.bf16.msra.mxu0 0
      %988 = vmatprep.subr.bf16.mxu0 0
      %989 = vmatpush1.bf16.msra.mxu0 0
      %990 = vmatprep.subr.bf16.mxu0 0
      %991 = vmatpush1.bf16.msra.mxu0 0
      %992 = vmatprep.subr.bf16.mxu0 0
      %993 = vmatpush1.bf16.msra.mxu0 0
      %994 = vmatprep.subr.bf16.mxu0 0
      %995 = vmatpush1.bf16.msra.mxu0 0
      %996 = vmatprep.subr.bf16.mxu0 0
      %997 = vmatpush1.bf16.msra.mxu0 0
      %998 = vmatprep.subr.bf16.mxu0 0
      %999 = vmatpush1.bf16.msra.mxu0 0
      %1000 = vmatprep.subr.bf16.mxu0 0
      %1001 = vmatpush1.bf16.msra.mxu0 0
      %1002 = vmatprep.subr.bf16.mxu0 0
      %1003 = vmatpush1.bf16.msra.mxu0 0
      %1004 = vmatprep.subr.bf16.mxu0 0
      %1005 = vmatpush1.bf16.msra.mxu0 0
      %1006 = vmatprep.subr.bf16.mxu0 0
      %1007 = vmatpush1.bf16.msra.mxu0 0
      %1008 = vmatprep.mubr.bf16.mxu0 0
      %1009 = vmatmul.mubr.bf16.gmra.mrb[0].mxu0 %v974
      %v1010 = vpop.f32.mrb[0].mxu0
      %v1011 = vadd.f32 0.0, %v1010
      %v1012 = vpop.f32.mrb[0].mxu0
      %v1013 = vpop.f32.mrb[0].mxu0
      %v1014 = vpop.f32.mrb[0].mxu0
      %1015 = vdwg.mxu0
      %v1016 = vadd.f32 %v959, %v1011
      %v1017 = vxor.u32 %v1016, 2147483648
      %v1018 = vmul.f32 %v1017, 1.442695
      %v1019 = vpow.pop %v1018
      %v1020 = vadd.f32 %v1019, 1.0
      %v1021 = vrcp.pop %v1020
      %v1022 = vmul.f32 1.0, %v1021
      %v1023 = vtanh.pop %v1016
      %1025 = vrot.lane.b32.xlu0 %v957, 32
      %v1026 = vpop.permute.xlu0 %1025
      %v1028 = vmul.f32 %v1022, %v1026
      %1030 = vrot.lane.b32.xlu0 %v1023, 64
      %v1031 = vpop.permute.xlu0 %1030
      %v1033 = vmul.f32 %v1022, %v1031
      %1035 = vrot.lane.b32.xlu0 %v1033, 32
      %v1036 = vpop.permute.xlu0 %1035
      %v1038 = vadd.f32 %v1028, %v1036
      %v1039 = vtanh.pop %v1038
      %1041 = vrot.lane.b32.xlu0 %v1039, 64
      %v1042 = vpop.permute.xlu0 %1041
      %v1044 = vmul.f32 %v1022, %v1042
      %1046 = vrot.lane.b32.xlu0 %v1044, 32
      %v1047 = vpop.permute.xlu0 %1046
      %1049 = vst.msk [vmem:[#allocation11] sm:$0xff] %vm126, %v1047
      %1051 = vrot.lane.b32.xlu0 %v1038, 96
      %v1052 = vpop.permute.xlu0 %1051
      %1054 = vst.msk [vmem:[#allocation12] sm:$0xff] %vm126, %v1052
    $region65: #{tpu_custom_call.1} parent=1 // pred_fallthru
      _
    // Predicated region
    $region66: #{tpu_custom_call.1} parent=1 // pred_check
      _
    $region67: #{tpu_custom_call.1} parent=1 // pred_check_branch
      %1056 = sbr.rel (0) target = $region69
    $region68: #{tpu_custom_call.1} parent=1 // pred_region
      %s1058 = ssub.s32 128, 128
      %1059 = vsyncadd [#allocation7], %s1058
      %s1061 = sshll.u32 [#allocation11], 4
      %s1062 = int_to_ptr.vmem [resolvable:$true] %s1061
      %1064 = dma.vmem_to_hbm [thread:$0]  %s1062, 128, %s5, [#allocation7]
    $region69: #{tpu_custom_call.1} parent=1 // pred_fallthru
      _
    // Predicated region
    $region70: #{tpu_custom_call.1} parent=1 // pred_check
      _
    $region71: #{tpu_custom_call.1} parent=1 // pred_check_branch
      %1066 = sbr.rel (0) target = $region73
    $region72: #{tpu_custom_call.1} parent=1 // pred_region
      %s1068 = ssub.s32 128, 128
      %1069 = vsyncadd [#allocation13], %s1068
      %s1071 = sshll.u32 [#allocation12], 4
      %s1072 = int_to_ptr.vmem [resolvable:$true] %s1071
      %1074 = dma.vmem_to_hbm [thread:$0]  %s1072, 128, %s6, [#allocation13]
    $region73: #{tpu_custom_call.1} parent=1 // pred_fallthru
      _
    // Predicated region
    $region74: #{tpu_custom_call.1} parent=1 // pred_check
      _
    $region75: #{tpu_custom_call.1} parent=1 // pred_check_branch
      %1076 = sbr.rel (0) target = $region77
    $region76: #{tpu_custom_call.1} parent=1 // pred_region
      %1077 = dma.done [#allocation7], 128
    $region77: #{tpu_custom_call.1} parent=1 // pred_fallthru
      _
    // Predicated region
    $region78: #{tpu_custom_call.1} parent=1 // pred_check
      _
    $region79: #{tpu_custom_call.1} parent=1 // pred_check_branch
      %1079 = sbr.rel (0) target = $region81
    $region80: #{tpu_custom_call.1} parent=1 // pred_region
      %1080 = dma.done [#allocation13], 128
    $region81: #{tpu_custom_call.1} parent=1 // pred_fallthru
      _
    %1081 = vsyncpa [#allocation6], 1
    %1082 = vsyncpa [#allocation9], 1
    %1083 = vsyncpa [#allocation7], 1
    %1084 = vsyncpa [#allocation13], 1

</llo_original>
